<compile_context>
chip_gen: v5e
topology: v5e:2x2
jax: 0.10.0
libtpu: 0.0.40
codegen_flags: <defaults>
</compile_context>

<pallas_src>
import functools

import jax
import jax.numpy as jnp
from jax import lax
from jax.experimental import pallas as pl
from jax.experimental.pallas import tpu as pltpu


def _contrastive_lstm_kernel(xi_ref, xj_ref, wih_ref, whh_ref, b_ref, out_ref,
                             xg_scr, *, seq_len, hidden_dim, fuse_views, unroll):
    """LSTM recurrence over time; writes the final hidden state(s).

    xi_ref/xj_ref: (B, T)  VMEM  the two views (input_dim == 1, feature dim dropped)
    wih_ref:       (1, 4H) VMEM  W_ih^T (f32), gate order [i, f, o, g]
    whh_ref:       (H, 4H) VMEM  W_hh^T (bf16), gate order [i, f, o, g]
    b_ref:         (1, 4H) VMEM  b_ih + b_hh (f32), gate order [i, f, o, g]
    out_ref:       (N, H)  VMEM  final hidden state (N = 2B fused, N = B gridded)
    xg_scr:        (T*N, 4H) VMEM scratch: precomputed input projection + bias
    """
    H = hidden_dim
    T = seq_len

    if fuse_views:
        # Single-TensorCore path: both views stacked along sublanes (2B rows).
        views = (xi_ref[...], xj_ref[...])
    else:
        # One grid step (== one TensorCore on v7x/megacore) per view.
        views = (jnp.where(pl.program_id(0) == 0, xi_ref[...], xj_ref[...]),)
    B = views[0].shape[0]
    N = B * len(views)

    wih = wih_ref[...]        # (1, 4H) f32
    bias = b_ref[...]         # (1, 4H) f32

    # (1) Input projection + bias for ALL timesteps.  K == 1 -> pure VPU broadcast
    #     multiply (no MXU push, no f32 matmul emulation), entirely off the
    #     h-dependent serial chain.  T is static -> trace-time Python loop.
    for t in range(T):
        for v, xv in enumerate(views):
            xg_scr[t * N + v * B:t * N + (v + 1) * B, :] = (
                xv[:, t:t + 1] * wih + bias)

    # (2) Loop-invariant recurrent weights; pre-laid-out bf16 (MXU-native).
    whh = whh_ref[...]        # (H, 4H) bf16

    h0 = jnp.zeros((N, H), jnp.float32)
    c0 = jnp.zeros((N, H), jnp.float32)

    def step(t, carry):
        h_prev, c_prev = carry
        row = pl.multiple_of(t * N, N)                 # sublane-aligned start
        xg = xg_scr[pl.ds(row, N), :]                  # (N, 4H); indep. of h/c

        # Only the h-dependent matmul sits on the serial critical path.
        # bf16 operands + f32 accumulate => single MXU pass.
        gates = xg + jnp.dot(h_prev.astype(jnp.bfloat16), whh,
                             preferred_element_type=jnp.float32)

        # Gate order [i, f, o, g]: one sigmoid slab (N, 3H) + tanh(g) + tanh(c)
        # = 3 EUP pushes per step.  Elementwise math kept in f32 for v5e.
        ifo = jax.nn.sigmoid(gates[:, :3 * H])
        g_g = jnp.tanh(gates[:, 3 * H:])
        i_g = ifo[:, :H]
        f_g = ifo[:, H:2 * H]
        o_g = ifo[:, 2 * H:]

        c_new = f_g * c_prev + i_g * g_g
        h_new = o_g * jnp.tanh(c_new)
        return (h_new, c_new)

    # (3) h/c live in vregs via the loop carry; fully unrolled for small static T.
    h_fin, _ = lax.fori_loop(0, T, step, (h0, c0), unroll=unroll)
    out_ref[...] = h_fin


def _permute_gates_ifog(w):
    """Permute PyTorch gate order [i, f, g, o] -> [i, f, o, g] along axis 0."""
    H = w.shape[0] // 4
    return jnp.concatenate([w[:2 * H], w[3 * H:], w[2 * H:3 * H]], axis=0)


def prepare_lstm_params(w_ih, w_hh, b_ih, b_hh):
    """One-time weight layout (call at model init, NOT per forward).

    Returns:
      wih_t: (I, 4H) f32    bias: (1, 4H) f32    whh_t: (H, 4H) bf16
    all in gate order [i, f, o, g].
    """
    H = w_hh.shape[1]
    wih_t = jnp.transpose(_permute_gates_ifog(w_ih)).astype(jnp.float32)
    whh_t = jnp.transpose(_permute_gates_ifog(w_hh)).astype(jnp.bfloat16)
    bias = _permute_gates_ifog(b_ih + b_hh).reshape(1, 4 * H).astype(jnp.float32)
    return wih_t, whh_t, bias


def tensorcores_per_chip() -> int:
    """Chips with 2 TensorCores (v7x, and v4/v5p megacore) get the parallel grid."""
    try:
        kind = jax.devices()[0].device_kind.lower()
    except Exception:
        return 1
    if "v7" in kind or "7x" in kind or "v4" in kind or "v5p" in kind:
        return 2
    return 1


def _lstm_pair_pallas(xi, xj, wih_t, whh_t, bias, *, hidden_dim, use_core_grid):
    """xi/xj: (B, T) f32.  Returns (2B, H) f32: rows [:B] = view i, [B:] = view j."""
    B, T = xi.shape
    H = hidden_dim
    unroll = True if T <= 32 else 8          # cap unroll if T ever grows

    kernel = functools.partial(_contrastive_lstm_kernel, seq_len=T,
                               hidden_dim=H, fuse_views=not use_core_grid,
                               unroll=unroll)

    if use_core_grid:
        # 2 TensorCores: one grid step per view, sharded across cores.
        return pl.pallas_call(
            kernel,
            out_shape=jax.ShapeDtypeStruct((2 * B, H), jnp.float32),
            grid=(2,),
            in_specs=[pl.BlockSpec((B, T), lambda v: (0, 0)),
                      pl.BlockSpec((B, T), lambda v: (0, 0)),
                      pl.BlockSpec((1, 4 * H), lambda v: (0, 0)),
                      pl.BlockSpec((H, 4 * H), lambda v: (0, 0)),
                      pl.BlockSpec((1, 4 * H), lambda v: (0, 0))],
            out_specs=pl.BlockSpec((B, H), lambda v: (v, 0)),
            scratch_shapes=[pltpu.VMEM((T * B, 4 * H), jnp.float32)],
            compiler_params=pltpu.CompilerParams(
                dimension_semantics=("parallel",)),
        )(xi, xj, wih_t, whh_t, bias)

    # Single-TensorCore (v5e/v6e): one launch, both views fused along sublanes.
    return pl.pallas_call(
        kernel,
        out_shape=jax.ShapeDtypeStruct((2 * B, H), jnp.float32),
        in_specs=[pl.BlockSpec(memory_space=pltpu.MemorySpace.VMEM)] * 5,
        out_specs=pl.BlockSpec(memory_space=pltpu.MemorySpace.VMEM),
        scratch_shapes=[pltpu.VMEM((T * 2 * B, 4 * H), jnp.float32)],
    )(xi, xj, wih_t, whh_t, bias)


@functools.partial(jax.jit, static_argnames=("hidden_dim", "use_core_grid"))
def contrastive_model_forward(x_i, x_j, wih_t, whh_t, bias, *, hidden_dim,
                              use_core_grid=False):
    """ContrastiveModel.forward: returns (h_i, h_j) = (encoder(x_i), encoder(x_j))."""
    B, T, I = x_i.shape
    assert I == 1, "TimeSeriesEncoder in the spec has input_dim == 1"
    xi2 = jnp.squeeze(x_i, axis=-1).astype(jnp.float32)   # (B, T): drop unit feature dim
    xj2 = jnp.squeeze(x_j, axis=-1).astype(jnp.float32)
    h = _lstm_pair_pallas(xi2, xj2, wih_t, whh_t, bias,
                          hidden_dim=hidden_dim, use_core_grid=use_core_grid)
    return h[:B], h[B:]


def _reference_lstm(x_btf, w_ih, w_hh, b_ih, b_hh):
    """Pure-JAX f32 reference (PyTorch LSTM equations, original [i,f,g,o] order)."""
    B, T, I = x_btf.shape
    H = w_hh.shape[1]
    h = jnp.zeros((B, H), jnp.float32)
    c = jnp.zeros((B, H), jnp.float32)
    for t in range(T):
        g = x_btf[:, t, :] @ w_ih.T + h @ w_hh.T + b_ih + b_hh
        i_g = jax.nn.sigmoid(g[:, 0 * H:1 * H])
        f_g = jax.nn.sigmoid(g[:, 1 * H:2 * H])
        g_g = jnp.tanh(g[:, 2 * H:3 * H])
        o_g = jax.nn.sigmoid(g[:, 3 * H:4 * H])
        c = f_g * c + i_g * g_g
        h = o_g * jnp.tanh(c)
    return h


if __name__ == "__main__":
    INPUT_DIM = 1
    HIDDEN_DIM = 16
    B, T = 8, 12

    key = jax.random.PRNGKey(0)
    k_xi, k_xj, k1, k2, k3, k4 = jax.random.split(key, 6)

    # Deterministic parameter init (PyTorch LSTM default: U(-1/sqrt(H), 1/sqrt(H))).
    bound = 1.0 / (HIDDEN_DIM ** 0.5)
    w_ih = jax.random.uniform(k1, (4 * HIDDEN_DIM, INPUT_DIM), jnp.float32, -bound, bound)
    w_hh = jax.random.uniform(k2, (4 * HIDDEN_DIM, HIDDEN_DIM), jnp.float32, -bound, bound)
    b_ih = jax.random.uniform(k3, (4 * HIDDEN_DIM,), jnp.float32, -bound, bound)
    b_hh = jax.random.uniform(k4, (4 * HIDDEN_DIM,), jnp.float32, -bound, bound)

    x_i = jax.random.normal(k_xi, (B, T, INPUT_DIM), jnp.float32)
    x_j = jax.random.normal(k_xj, (B, T, INPUT_DIM), jnp.float32)

    # One-time weight layout, hoisted out of the per-call jit.
    wih_t, whh_t, bias = jax.block_until_ready(
        prepare_lstm_params(w_ih, w_hh, b_ih, b_hh))

    use_core_grid = tensorcores_per_chip() >= 2

    h_i, h_j = contrastive_model_forward(x_i, x_j, wih_t, whh_t, bias,
                                         hidden_dim=HIDDEN_DIM,
                                         use_core_grid=use_core_grid)
    jax.block_until_ready((h_i, h_j))

    # Correctness check against the pure-JAX f32 reference.  Tolerance relaxed
    # (bf16 operands on the recurrent matmul).
    ref_i = _reference_lstm(x_i, w_ih, w_hh, b_ih, b_hh)
    ref_j = _reference_lstm(x_j, w_ih, w_hh, b_ih, b_hh)
    assert h_i.shape == (B, HIDDEN_DIM) and h_j.shape == (B, HIDDEN_DIM)
    err_i = float(jnp.max(jnp.abs(h_i - ref_i)))
    err_j = float(jnp.max(jnp.abs(h_j - ref_j)))
    assert err_i < 2e-2, f"h_i mismatch vs reference (max abs err {err_i})"
    assert err_j < 2e-2, f"h_j mismatch vs reference (max abs err {err_j})"

    print("KERNEL_OK")
</pallas_src>

<mosaic_0001>
module attributes {stable_mosaic.version = 11 : i64} {
  func.func @_contrastive_lstm_kernel(%arg0: memref<8x12xf32, #tpu.memory_space<vmem>>, %arg1: memref<8x12xf32, #tpu.memory_space<vmem>>, %arg2: memref<1x64xf32, #tpu.memory_space<vmem>>, %arg3: memref<16x64xbf16, #tpu.memory_space<vmem>>, %arg4: memref<1x64xf32, #tpu.memory_space<vmem>>, %arg5: memref<16x16xf32, #tpu.memory_space<vmem>>, %arg6: memref<192x64xf32, #tpu.memory_space<vmem>>) attributes {dimension_semantics = [], scalar_prefetch = 0 : i64, scratch_operands = 1 : i64, tpu.core_type = #tpu.core_type<tc>} {
    %c0 = arith.constant 0 : index
    %c0_0 = arith.constant 0 : index
    %0 = vector.load %arg0[%c0, %c0_0] : memref<8x12xf32, #tpu.memory_space<vmem>>, vector<8x12xf32>
    %c0_1 = arith.constant 0 : index
    %c0_2 = arith.constant 0 : index
    %1 = vector.load %arg1[%c0_1, %c0_2] : memref<8x12xf32, #tpu.memory_space<vmem>>, vector<8x12xf32>
    %c0_3 = arith.constant 0 : index
    %c0_4 = arith.constant 0 : index
    %2 = vector.load %arg2[%c0_3, %c0_4] : memref<1x64xf32, #tpu.memory_space<vmem>>, vector<1x64xf32>
    %c0_5 = arith.constant 0 : index
    %c0_6 = arith.constant 0 : index
    %3 = vector.load %arg4[%c0_5, %c0_6] : memref<1x64xf32, #tpu.memory_space<vmem>>, vector<1x64xf32>
    %4 = vector.extract_strided_slice %0 {offsets = [0, 0], sizes = [8, 1], strides = [1, 1]} : vector<8x12xf32> to vector<8x1xf32>
    %5 = vector.broadcast %4 : vector<8x1xf32> to vector<8x64xf32>
    %6 = vector.broadcast %2 : vector<1x64xf32> to vector<8x64xf32>
    %7 = arith.mulf %5, %6 : vector<8x64xf32>
    %8 = vector.broadcast %3 : vector<1x64xf32> to vector<8x64xf32>
    %9 = arith.addf %7, %8 : vector<8x64xf32>
    %c0_7 = arith.constant 0 : index
    %c0_8 = arith.constant 0 : index
    %10 = vector.load %arg6[%c0_7, %c0_8] : memref<192x64xf32, #tpu.memory_space<vmem>>, vector<8x64xf32>
    tpu.vector_store %arg6[%c0_7, %c0_8], %9 {strides = array<i32>} : memref<192x64xf32, #tpu.memory_space<vmem>>, vector<8x64xf32>,
    %11 = vector.extract_strided_slice %1 {offsets = [0, 0], sizes = [8, 1], strides = [1, 1]} : vector<8x12xf32> to vector<8x1xf32>
    %12 = vector.broadcast %11 : vector<8x1xf32> to vector<8x64xf32>
    %13 = vector.broadcast %2 : vector<1x64xf32> to vector<8x64xf32>
    %14 = arith.mulf %12, %13 : vector<8x64xf32>
    %15 = vector.broadcast %3 : vector<1x64xf32> to vector<8x64xf32>
    %16 = arith.addf %14, %15 : vector<8x64xf32>
    %c8 = arith.constant 8 : index
    %c0_9 = arith.constant 0 : index
    %17 = vector.load %arg6[%c8, %c0_9] : memref<192x64xf32, #tpu.memory_space<vmem>>, vector<8x64xf32>
    tpu.vector_store %arg6[%c8, %c0_9], %16 {strides = array<i32>} : memref<192x64xf32, #tpu.memory_space<vmem>>, vector<8x64xf32>,
    %18 = vector.extract_strided_slice %0 {offsets = [0, 1], sizes = [8, 1], strides = [1, 1]} : vector<8x12xf32> to vector<8x1xf32>
    %19 = vector.broadcast %18 : vector<8x1xf32> to vector<8x64xf32>
    %20 = vector.broadcast %2 : vector<1x64xf32> to vector<8x64xf32>
    %21 = arith.mulf %19, %20 : vector<8x64xf32>
    %22 = vector.broadcast %3 : vector<1x64xf32> to vector<8x64xf32>
    %23 = arith.addf %21, %22 : vector<8x64xf32>
    %c16 = arith.constant 16 : index
    %c0_10 = arith.constant 0 : index
    %24 = vector.load %arg6[%c16, %c0_10] : memref<192x64xf32, #tpu.memory_space<vmem>>, vector<8x64xf32>
    tpu.vector_store %arg6[%c16, %c0_10], %23 {strides = array<i32>} : memref<192x64xf32, #tpu.memory_space<vmem>>, vector<8x64xf32>,
    %25 = vector.extract_strided_slice %1 {offsets = [0, 1], sizes = [8, 1], strides = [1, 1]} : vector<8x12xf32> to vector<8x1xf32>
    %26 = vector.broadcast %25 : vector<8x1xf32> to vector<8x64xf32>
    %27 = vector.broadcast %2 : vector<1x64xf32> to vector<8x64xf32>
    %28 = arith.mulf %26, %27 : vector<8x64xf32>
    %29 = vector.broadcast %3 : vector<1x64xf32> to vector<8x64xf32>
    %30 = arith.addf %28, %29 : vector<8x64xf32>
    %c24 = arith.constant 24 : index
    %c0_11 = arith.constant 0 : index
    %31 = vector.load %arg6[%c24, %c0_11] : memref<192x64xf32, #tpu.memory_space<vmem>>, vector<8x64xf32>
    tpu.vector_store %arg6[%c24, %c0_11], %30 {strides = array<i32>} : memref<192x64xf32, #tpu.memory_space<vmem>>, vector<8x64xf32>,
    %32 = vector.extract_strided_slice %0 {offsets = [0, 2], sizes = [8, 1], strides = [1, 1]} : vector<8x12xf32> to vector<8x1xf32>
    %33 = vector.broadcast %32 : vector<8x1xf32> to vector<8x64xf32>
    %34 = vector.broadcast %2 : vector<1x64xf32> to vector<8x64xf32>
    %35 = arith.mulf %33, %34 : vector<8x64xf32>
    %36 = vector.broadcast %3 : vector<1x64xf32> to vector<8x64xf32>
    %37 = arith.addf %35, %36 : vector<8x64xf32>
    %c32 = arith.constant 32 : index
    %c0_12 = arith.constant 0 : index
    %38 = vector.load %arg6[%c32, %c0_12] : memref<192x64xf32, #tpu.memory_space<vmem>>, vector<8x64xf32>
    tpu.vector_store %arg6[%c32, %c0_12], %37 {strides = array<i32>} : memref<192x64xf32, #tpu.memory_space<vmem>>, vector<8x64xf32>,
    %39 = vector.extract_strided_slice %1 {offsets = [0, 2], sizes = [8, 1], strides = [1, 1]} : vector<8x12xf32> to vector<8x1xf32>
    %40 = vector.broadcast %39 : vector<8x1xf32> to vector<8x64xf32>
    %41 = vector.broadcast %2 : vector<1x64xf32> to vector<8x64xf32>
    %42 = arith.mulf %40, %41 : vector<8x64xf32>
    %43 = vector.broadcast %3 : vector<1x64xf32> to vector<8x64xf32>
    %44 = arith.addf %42, %43 : vector<8x64xf32>
    %c40 = arith.constant 40 : index
    %c0_13 = arith.constant 0 : index
    %45 = vector.load %arg6[%c40, %c0_13] : memref<192x64xf32, #tpu.memory_space<vmem>>, vector<8x64xf32>
    tpu.vector_store %arg6[%c40, %c0_13], %44 {strides = array<i32>} : memref<192x64xf32, #tpu.memory_space<vmem>>, vector<8x64xf32>,
    %46 = vector.extract_strided_slice %0 {offsets = [0, 3], sizes = [8, 1], strides = [1, 1]} : vector<8x12xf32> to vector<8x1xf32>
    %47 = vector.broadcast %46 : vector<8x1xf32> to vector<8x64xf32>
    %48 = vector.broadcast %2 : vector<1x64xf32> to vector<8x64xf32>
    %49 = arith.mulf %47, %48 : vector<8x64xf32>
    %50 = vector.broadcast %3 : vector<1x64xf32> to vector<8x64xf32>
    %51 = arith.addf %49, %50 : vector<8x64xf32>
    %c48 = arith.constant 48 : index
    %c0_14 = arith.constant 0 : index
    %52 = vector.load %arg6[%c48, %c0_14] : memref<192x64xf32, #tpu.memory_space<vmem>>, vector<8x64xf32>
    tpu.vector_store %arg6[%c48, %c0_14], %51 {strides = array<i32>} : memref<192x64xf32, #tpu.memory_space<vmem>>, vector<8x64xf32>,
    %53 = vector.extract_strided_slice %1 {offsets = [0, 3], sizes = [8, 1], strides = [1, 1]} : vector<8x12xf32> to vector<8x1xf32>
    %54 = vector.broadcast %53 : vector<8x1xf32> to vector<8x64xf32>
    %55 = vector.broadcast %2 : vector<1x64xf32> to vector<8x64xf32>
    %56 = arith.mulf %54, %55 : vector<8x64xf32>
    %57 = vector.broadcast %3 : vector<1x64xf32> to vector<8x64xf32>
    %58 = arith.addf %56, %57 : vector<8x64xf32>
    %c56 = arith.constant 56 : index
    %c0_15 = arith.constant 0 : index
    %59 = vector.load %arg6[%c56, %c0_15] : memref<192x64xf32, #tpu.memory_space<vmem>>, vector<8x64xf32>
    tpu.vector_store %arg6[%c56, %c0_15], %58 {strides = array<i32>} : memref<192x64xf32, #tpu.memory_space<vmem>>, vector<8x64xf32>,
    %60 = vector.extract_strided_slice %0 {offsets = [0, 4], sizes = [8, 1], strides = [1, 1]} : vector<8x12xf32> to vector<8x1xf32>
    %61 = vector.broadcast %60 : vector<8x1xf32> to vector<8x64xf32>
    %62 = vector.broadcast %2 : vector<1x64xf32> to vector<8x64xf32>
    %63 = arith.mulf %61, %62 : vector<8x64xf32>
    %64 = vector.broadcast %3 : vector<1x64xf32> to vector<8x64xf32>
    %65 = arith.addf %63, %64 : vector<8x64xf32>
    %c64 = arith.constant 64 : index
    %c0_16 = arith.constant 0 : index
    %66 = vector.load %arg6[%c64, %c0_16] : memref<192x64xf32, #tpu.memory_space<vmem>>, vector<8x64xf32>
    tpu.vector_store %arg6[%c64, %c0_16], %65 {strides = array<i32>} : memref<192x64xf32, #tpu.memory_space<vmem>>, vector<8x64xf32>,
    %67 = vector.extract_strided_slice %1 {offsets = [0, 4], sizes = [8, 1], strides = [1, 1]} : vector<8x12xf32> to vector<8x1xf32>
    %68 = vector.broadcast %67 : vector<8x1xf32> to vector<8x64xf32>
    %69 = vector.broadcast %2 : vector<1x64xf32> to vector<8x64xf32>
    %70 = arith.mulf %68, %69 : vector<8x64xf32>
    %71 = vector.broadcast %3 : vector<1x64xf32> to vector<8x64xf32>
    %72 = arith.addf %70, %71 : vector<8x64xf32>
    %c72 = arith.constant 72 : index
    %c0_17 = arith.constant 0 : index
    %73 = vector.load %arg6[%c72, %c0_17] : memref<192x64xf32, #tpu.memory_space<vmem>>, vector<8x64xf32>
    tpu.vector_store %arg6[%c72, %c0_17], %72 {strides = array<i32>} : memref<192x64xf32, #tpu.memory_space<vmem>>, vector<8x64xf32>,
    %74 = vector.extract_strided_slice %0 {offsets = [0, 5], sizes = [8, 1], strides = [1, 1]} : vector<8x12xf32> to vector<8x1xf32>
    %75 = vector.broadcast %74 : vector<8x1xf32> to vector<8x64xf32>
    %76 = vector.broadcast %2 : vector<1x64xf32> to vector<8x64xf32>
    %77 = arith.mulf %75, %76 : vector<8x64xf32>
    %78 = vector.broadcast %3 : vector<1x64xf32> to vector<8x64xf32>
    %79 = arith.addf %77, %78 : vector<8x64xf32>
    %c80 = arith.constant 80 : index
    %c0_18 = arith.constant 0 : index
    %80 = vector.load %arg6[%c80, %c0_18] : memref<192x64xf32, #tpu.memory_space<vmem>>, vector<8x64xf32>
    tpu.vector_store %arg6[%c80, %c0_18], %79 {strides = array<i32>} : memref<192x64xf32, #tpu.memory_space<vmem>>, vector<8x64xf32>,
    %81 = vector.extract_strided_slice %1 {offsets = [0, 5], sizes = [8, 1], strides = [1, 1]} : vector<8x12xf32> to vector<8x1xf32>
    %82 = vector.broadcast %81 : vector<8x1xf32> to vector<8x64xf32>
    %83 = vector.broadcast %2 : vector<1x64xf32> to vector<8x64xf32>
    %84 = arith.mulf %82, %83 : vector<8x64xf32>
    %85 = vector.broadcast %3 : vector<1x64xf32> to vector<8x64xf32>
    %86 = arith.addf %84, %85 : vector<8x64xf32>
    %c88 = arith.constant 88 : index
    %c0_19 = arith.constant 0 : index
    %87 = vector.load %arg6[%c88, %c0_19] : memref<192x64xf32, #tpu.memory_space<vmem>>, vector<8x64xf32>
    tpu.vector_store %arg6[%c88, %c0_19], %86 {strides = array<i32>} : memref<192x64xf32, #tpu.memory_space<vmem>>, vector<8x64xf32>,
    %88 = vector.extract_strided_slice %0 {offsets = [0, 6], sizes = [8, 1], strides = [1, 1]} : vector<8x12xf32> to vector<8x1xf32>
    %89 = vector.broadcast %88 : vector<8x1xf32> to vector<8x64xf32>
    %90 = vector.broadcast %2 : vector<1x64xf32> to vector<8x64xf32>
    %91 = arith.mulf %89, %90 : vector<8x64xf32>
    %92 = vector.broadcast %3 : vector<1x64xf32> to vector<8x64xf32>
    %93 = arith.addf %91, %92 : vector<8x64xf32>
    %c96 = arith.constant 96 : index
    %c0_20 = arith.constant 0 : index
    %94 = vector.load %arg6[%c96, %c0_20] : memref<192x64xf32, #tpu.memory_space<vmem>>, vector<8x64xf32>
    tpu.vector_store %arg6[%c96, %c0_20], %93 {strides = array<i32>} : memref<192x64xf32, #tpu.memory_space<vmem>>, vector<8x64xf32>,
    %95 = vector.extract_strided_slice %1 {offsets = [0, 6], sizes = [8, 1], strides = [1, 1]} : vector<8x12xf32> to vector<8x1xf32>
    %96 = vector.broadcast %95 : vector<8x1xf32> to vector<8x64xf32>
    %97 = vector.broadcast %2 : vector<1x64xf32> to vector<8x64xf32>
    %98 = arith.mulf %96, %97 : vector<8x64xf32>
    %99 = vector.broadcast %3 : vector<1x64xf32> to vector<8x64xf32>
    %100 = arith.addf %98, %99 : vector<8x64xf32>
    %c104 = arith.constant 104 : index
    %c0_21 = arith.constant 0 : index
    %101 = vector.load %arg6[%c104, %c0_21] : memref<192x64xf32, #tpu.memory_space<vmem>>, vector<8x64xf32>
    tpu.vector_store %arg6[%c104, %c0_21], %100 {strides = array<i32>} : memref<192x64xf32, #tpu.memory_space<vmem>>, vector<8x64xf32>,
    %102 = vector.extract_strided_slice %0 {offsets = [0, 7], sizes = [8, 1], strides = [1, 1]} : vector<8x12xf32> to vector<8x1xf32>
    %103 = vector.broadcast %102 : vector<8x1xf32> to vector<8x64xf32>
    %104 = vector.broadcast %2 : vector<1x64xf32> to vector<8x64xf32>
    %105 = arith.mulf %103, %104 : vector<8x64xf32>
    %106 = vector.broadcast %3 : vector<1x64xf32> to vector<8x64xf32>
    %107 = arith.addf %105, %106 : vector<8x64xf32>
    %c112 = arith.constant 112 : index
    %c0_22 = arith.constant 0 : index
    %108 = vector.load %arg6[%c112, %c0_22] : memref<192x64xf32, #tpu.memory_space<vmem>>, vector<8x64xf32>
    tpu.vector_store %arg6[%c112, %c0_22], %107 {strides = array<i32>} : memref<192x64xf32, #tpu.memory_space<vmem>>, vector<8x64xf32>,
    %109 = vector.extract_strided_slice %1 {offsets = [0, 7], sizes = [8, 1], strides = [1, 1]} : vector<8x12xf32> to vector<8x1xf32>
    %110 = vector.broadcast %109 : vector<8x1xf32> to vector<8x64xf32>
    %111 = vector.broadcast %2 : vector<1x64xf32> to vector<8x64xf32>
    %112 = arith.mulf %110, %111 : vector<8x64xf32>
    %113 = vector.broadcast %3 : vector<1x64xf32> to vector<8x64xf32>
    %114 = arith.addf %112, %113 : vector<8x64xf32>
    %c120 = arith.constant 120 : index
    %c0_23 = arith.constant 0 : index
    %115 = vector.load %arg6[%c120, %c0_23] : memref<192x64xf32, #tpu.memory_space<vmem>>, vector<8x64xf32>
    tpu.vector_store %arg6[%c120, %c0_23], %114 {strides = array<i32>} : memref<192x64xf32, #tpu.memory_space<vmem>>, vector<8x64xf32>,
    %116 = vector.extract_strided_slice %0 {offsets = [0, 8], sizes = [8, 1], strides = [1, 1]} : vector<8x12xf32> to vector<8x1xf32>
    %117 = vector.broadcast %116 : vector<8x1xf32> to vector<8x64xf32>
    %118 = vector.broadcast %2 : vector<1x64xf32> to vector<8x64xf32>
    %119 = arith.mulf %117, %118 : vector<8x64xf32>
    %120 = vector.broadcast %3 : vector<1x64xf32> to vector<8x64xf32>
    %121 = arith.addf %119, %120 : vector<8x64xf32>
    %c128 = arith.constant 128 : index
    %c0_24 = arith.constant 0 : index
    %122 = vector.load %arg6[%c128, %c0_24] : memref<192x64xf32, #tpu.memory_space<vmem>>, vector<8x64xf32>
    tpu.vector_store %arg6[%c128, %c0_24], %121 {strides = array<i32>} : memref<192x64xf32, #tpu.memory_space<vmem>>, vector<8x64xf32>,
    %123 = vector.extract_strided_slice %1 {offsets = [0, 8], sizes = [8, 1], strides = [1, 1]} : vector<8x12xf32> to vector<8x1xf32>
    %124 = vector.broadcast %123 : vector<8x1xf32> to vector<8x64xf32>
    %125 = vector.broadcast %2 : vector<1x64xf32> to vector<8x64xf32>
    %126 = arith.mulf %124, %125 : vector<8x64xf32>
    %127 = vector.broadcast %3 : vector<1x64xf32> to vector<8x64xf32>
    %128 = arith.addf %126, %127 : vector<8x64xf32>
    %c136 = arith.constant 136 : index
    %c0_25 = arith.constant 0 : index
    %129 = vector.load %arg6[%c136, %c0_25] : memref<192x64xf32, #tpu.memory_space<vmem>>, vector<8x64xf32>
    tpu.vector_store %arg6[%c136, %c0_25], %128 {strides = array<i32>} : memref<192x64xf32, #tpu.memory_space<vmem>>, vector<8x64xf32>,
    %130 = vector.extract_strided_slice %0 {offsets = [0, 9], sizes = [8, 1], strides = [1, 1]} : vector<8x12xf32> to vector<8x1xf32>
    %131 = vector.broadcast %130 : vector<8x1xf32> to vector<8x64xf32>
    %132 = vector.broadcast %2 : vector<1x64xf32> to vector<8x64xf32>
    %133 = arith.mulf %131, %132 : vector<8x64xf32>
    %134 = vector.broadcast %3 : vector<1x64xf32> to vector<8x64xf32>
    %135 = arith.addf %133, %134 : vector<8x64xf32>
    %c144 = arith.constant 144 : index
    %c0_26 = arith.constant 0 : index
    %136 = vector.load %arg6[%c144, %c0_26] : memref<192x64xf32, #tpu.memory_space<vmem>>, vector<8x64xf32>
    tpu.vector_store %arg6[%c144, %c0_26], %135 {strides = array<i32>} : memref<192x64xf32, #tpu.memory_space<vmem>>, vector<8x64xf32>,
    %137 = vector.extract_strided_slice %1 {offsets = [0, 9], sizes = [8, 1], strides = [1, 1]} : vector<8x12xf32> to vector<8x1xf32>
    %138 = vector.broadcast %137 : vector<8x1xf32> to vector<8x64xf32>
    %139 = vector.broadcast %2 : vector<1x64xf32> to vector<8x64xf32>
    %140 = arith.mulf %138, %139 : vector<8x64xf32>
    %141 = vector.broadcast %3 : vector<1x64xf32> to vector<8x64xf32>
    %142 = arith.addf %140, %141 : vector<8x64xf32>
    %c152 = arith.constant 152 : index
    %c0_27 = arith.constant 0 : index
    %143 = vector.load %arg6[%c152, %c0_27] : memref<192x64xf32, #tpu.memory_space<vmem>>, vector<8x64xf32>
    tpu.vector_store %arg6[%c152, %c0_27], %142 {strides = array<i32>} : memref<192x64xf32, #tpu.memory_space<vmem>>, vector<8x64xf32>,
    %144 = vector.extract_strided_slice %0 {offsets = [0, 10], sizes = [8, 1], strides = [1, 1]} : vector<8x12xf32> to vector<8x1xf32>
    %145 = vector.broadcast %144 : vector<8x1xf32> to vector<8x64xf32>
    %146 = vector.broadcast %2 : vector<1x64xf32> to vector<8x64xf32>
    %147 = arith.mulf %145, %146 : vector<8x64xf32>
    %148 = vector.broadcast %3 : vector<1x64xf32> to vector<8x64xf32>
    %149 = arith.addf %147, %148 : vector<8x64xf32>
    %c160 = arith.constant 160 : index
    %c0_28 = arith.constant 0 : index
    %150 = vector.load %arg6[%c160, %c0_28] : memref<192x64xf32, #tpu.memory_space<vmem>>, vector<8x64xf32>
    tpu.vector_store %arg6[%c160, %c0_28], %149 {strides = array<i32>} : memref<192x64xf32, #tpu.memory_space<vmem>>, vector<8x64xf32>,
    %151 = vector.extract_strided_slice %1 {offsets = [0, 10], sizes = [8, 1], strides = [1, 1]} : vector<8x12xf32> to vector<8x1xf32>
    %152 = vector.broadcast %151 : vector<8x1xf32> to vector<8x64xf32>
    %153 = vector.broadcast %2 : vector<1x64xf32> to vector<8x64xf32>
    %154 = arith.mulf %152, %153 : vector<8x64xf32>
    %155 = vector.broadcast %3 : vector<1x64xf32> to vector<8x64xf32>
    %156 = arith.addf %154, %155 : vector<8x64xf32>
    %c168 = arith.constant 168 : index
    %c0_29 = arith.constant 0 : index
    %157 = vector.load %arg6[%c168, %c0_29] : memref<192x64xf32, #tpu.memory_space<vmem>>, vector<8x64xf32>
    tpu.vector_store %arg6[%c168, %c0_29], %156 {strides = array<i32>} : memref<192x64xf32, #tpu.memory_space<vmem>>, vector<8x64xf32>,
    %158 = vector.extract_strided_slice %0 {offsets = [0, 11], sizes = [8, 1], strides = [1, 1]} : vector<8x12xf32> to vector<8x1xf32>
    %159 = vector.broadcast %158 : vector<8x1xf32> to vector<8x64xf32>
    %160 = vector.broadcast %2 : vector<1x64xf32> to vector<8x64xf32>
    %161 = arith.mulf %159, %160 : vector<8x64xf32>
    %162 = vector.broadcast %3 : vector<1x64xf32> to vector<8x64xf32>
    %163 = arith.addf %161, %162 : vector<8x64xf32>
    %c176 = arith.constant 176 : index
    %c0_30 = arith.constant 0 : index
    %164 = vector.load %arg6[%c176, %c0_30] : memref<192x64xf32, #tpu.memory_space<vmem>>, vector<8x64xf32>
    tpu.vector_store %arg6[%c176, %c0_30], %163 {strides = array<i32>} : memref<192x64xf32, #tpu.memory_space<vmem>>, vector<8x64xf32>,
    %165 = vector.extract_strided_slice %1 {offsets = [0, 11], sizes = [8, 1], strides = [1, 1]} : vector<8x12xf32> to vector<8x1xf32>
    %166 = vector.broadcast %165 : vector<8x1xf32> to vector<8x64xf32>
    %167 = vector.broadcast %2 : vector<1x64xf32> to vector<8x64xf32>
    %168 = arith.mulf %166, %167 : vector<8x64xf32>
    %169 = vector.broadcast %3 : vector<1x64xf32> to vector<8x64xf32>
    %170 = arith.addf %168, %169 : vector<8x64xf32>
    %c184 = arith.constant 184 : index
    %c0_31 = arith.constant 0 : index
    %171 = vector.load %arg6[%c184, %c0_31] : memref<192x64xf32, #tpu.memory_space<vmem>>, vector<8x64xf32>
    tpu.vector_store %arg6[%c184, %c0_31], %170 {strides = array<i32>} : memref<192x64xf32, #tpu.memory_space<vmem>>, vector<8x64xf32>,
    %c0_32 = arith.constant 0 : index
    %c0_33 = arith.constant 0 : index
    %172 = vector.load %arg3[%c0_32, %c0_33] : memref<16x64xbf16, #tpu.memory_space<vmem>>, vector<16x64xbf16>
    %cst = arith.constant 0.000000e+00 : f32
    %173 = vector.broadcast %cst : f32 to vector<16x16xf32>
    %cst_34 = arith.constant 0.000000e+00 : f32
    %174 = vector.broadcast %cst_34 : f32 to vector<16x16xf32>
    %c0_i32 = arith.constant 0 : i32
    %c16_i32 = arith.constant 16 : i32
    %175 = arith.muli %c0_i32, %c16_i32 : i32
    %176 = tpu.assume_multiple %175, 16 : i32
    %177 = arith.index_cast %176 : i32 to index
    %c0_35 = arith.constant 0 : index
    %178 = vector.load %arg6[%177, %c0_35] : memref<192x64xf32, #tpu.memory_space<vmem>>, vector<16x64xf32>
    %179 = arith.truncf %173 : vector<16x16xf32> to vector<16x16xbf16>
    %cst_36 = arith.constant dense<0.000000e+00> : vector<16x64xf32>
    %180 = tpu.matmul %179, %172, %cst_36 {dimension_numbers = #tpu.dot_dimension_numbers<[1], [0], [0], [1], [0, 0, 1, 1], [], []>} : vector<16x16xbf16>, vector<16x64xbf16>, vector<16x64xf32> -> vector<16x64xf32>
    %181 = arith.addf %178, %180 : vector<16x64xf32>
    %182 = vector.extract_strided_slice %181 {offsets = [0, 0], sizes = [16, 48], strides = [1, 1]} : vector<16x64xf32> to vector<16x48xf32>
    %183 = arith.negf %182 : vector<16x48xf32>
    %184 = math.exp %183 : vector<16x48xf32>
    %cst_37 = arith.constant 1.000000e+00 : f32
    %185 = vector.broadcast %cst_37 : f32 to vector<16x48xf32>
    %186 = arith.addf %185, %184 : vector<16x48xf32>
    %187 = arith.divf %185, %186 : vector<16x48xf32>
    %188 = vector.extract_strided_slice %181 {offsets = [0, 48], sizes = [16, 16], strides = [1, 1]} : vector<16x64xf32> to vector<16x16xf32>
    %189 = math.tanh %188 : vector<16x16xf32>
    %190 = vector.extract_strided_slice %187 {offsets = [0, 0], sizes = [16, 16], strides = [1, 1]} : vector<16x48xf32> to vector<16x16xf32>
    %191 = vector.extract_strided_slice %187 {offsets = [0, 16], sizes = [16, 16], strides = [1, 1]} : vector<16x48xf32> to vector<16x16xf32>
    %192 = vector.extract_strided_slice %187 {offsets = [0, 32], sizes = [16, 16], strides = [1, 1]} : vector<16x48xf32> to vector<16x16xf32>
    %193 = arith.mulf %191, %174 : vector<16x16xf32>
    %194 = arith.mulf %190, %189 : vector<16x16xf32>
    %195 = arith.addf %193, %194 : vector<16x16xf32>
    %196 = math.tanh %195 : vector<16x16xf32>
    %197 = arith.mulf %192, %196 : vector<16x16xf32>
    %c1_i32 = arith.constant 1 : i32
    %c16_i32_38 = arith.constant 16 : i32
    %198 = arith.muli %c1_i32, %c16_i32_38 : i32
    %199 = tpu.assume_multiple %198, 16 : i32
    %200 = arith.index_cast %199 : i32 to index
    %c0_39 = arith.constant 0 : index
    %201 = vector.load %arg6[%200, %c0_39] : memref<192x64xf32, #tpu.memory_space<vmem>>, vector<16x64xf32>
    %202 = arith.truncf %197 : vector<16x16xf32> to vector<16x16xbf16>
    %cst_40 = arith.constant dense<0.000000e+00> : vector<16x64xf32>
    %203 = tpu.matmul %202, %172, %cst_40 {dimension_numbers = #tpu.dot_dimension_numbers<[1], [0], [0], [1], [0, 0, 1, 1], [], []>} : vector<16x16xbf16>, vector<16x64xbf16>, vector<16x64xf32> -> vector<16x64xf32>
    %204 = arith.addf %201, %203 : vector<16x64xf32>
    %205 = vector.extract_strided_slice %204 {offsets = [0, 0], sizes = [16, 48], strides = [1, 1]} : vector<16x64xf32> to vector<16x48xf32>
    %206 = arith.negf %205 : vector<16x48xf32>
    %207 = math.exp %206 : vector<16x48xf32>
    %cst_41 = arith.constant 1.000000e+00 : f32
    %208 = vector.broadcast %cst_41 : f32 to vector<16x48xf32>
    %209 = arith.addf %208, %207 : vector<16x48xf32>
    %210 = arith.divf %208, %209 : vector<16x48xf32>
    %211 = vector.extract_strided_slice %204 {offsets = [0, 48], sizes = [16, 16], strides = [1, 1]} : vector<16x64xf32> to vector<16x16xf32>
    %212 = math.tanh %211 : vector<16x16xf32>
    %213 = vector.extract_strided_slice %210 {offsets = [0, 0], sizes = [16, 16], strides = [1, 1]} : vector<16x48xf32> to vector<16x16xf32>
    %214 = vector.extract_strided_slice %210 {offsets = [0, 16], sizes = [16, 16], strides = [1, 1]} : vector<16x48xf32> to vector<16x16xf32>
    %215 = vector.extract_strided_slice %210 {offsets = [0, 32], sizes = [16, 16], strides = [1, 1]} : vector<16x48xf32> to vector<16x16xf32>
    %216 = arith.mulf %214, %195 : vector<16x16xf32>
    %217 = arith.mulf %213, %212 : vector<16x16xf32>
    %218 = arith.addf %216, %217 : vector<16x16xf32>
    %219 = math.tanh %218 : vector<16x16xf32>
    %220 = arith.mulf %215, %219 : vector<16x16xf32>
    %c2_i32 = arith.constant 2 : i32
    %c16_i32_42 = arith.constant 16 : i32
    %221 = arith.muli %c2_i32, %c16_i32_42 : i32
    %222 = tpu.assume_multiple %221, 16 : i32
    %223 = arith.index_cast %222 : i32 to index
    %c0_43 = arith.constant 0 : index
    %224 = vector.load %arg6[%223, %c0_43] : memref<192x64xf32, #tpu.memory_space<vmem>>, vector<16x64xf32>
    %225 = arith.truncf %220 : vector<16x16xf32> to vector<16x16xbf16>
    %cst_44 = arith.constant dense<0.000000e+00> : vector<16x64xf32>
    %226 = tpu.matmul %225, %172, %cst_44 {dimension_numbers = #tpu.dot_dimension_numbers<[1], [0], [0], [1], [0, 0, 1, 1], [], []>} : vector<16x16xbf16>, vector<16x64xbf16>, vector<16x64xf32> -> vector<16x64xf32>
    %227 = arith.addf %224, %226 : vector<16x64xf32>
    %228 = vector.extract_strided_slice %227 {offsets = [0, 0], sizes = [16, 48], strides = [1, 1]} : vector<16x64xf32> to vector<16x48xf32>
    %229 = arith.negf %228 : vector<16x48xf32>
    %230 = math.exp %229 : vector<16x48xf32>
    %cst_45 = arith.constant 1.000000e+00 : f32
    %231 = vector.broadcast %cst_45 : f32 to vector<16x48xf32>
    %232 = arith.addf %231, %230 : vector<16x48xf32>
    %233 = arith.divf %231, %232 : vector<16x48xf32>
    %234 = vector.extract_strided_slice %227 {offsets = [0, 48], sizes = [16, 16], strides = [1, 1]} : vector<16x64xf32> to vector<16x16xf32>
    %235 = math.tanh %234 : vector<16x16xf32>
    %236 = vector.extract_strided_slice %233 {offsets = [0, 0], sizes = [16, 16], strides = [1, 1]} : vector<16x48xf32> to vector<16x16xf32>
    %237 = vector.extract_strided_slice %233 {offsets = [0, 16], sizes = [16, 16], strides = [1, 1]} : vector<16x48xf32> to vector<16x16xf32>
    %238 = vector.extract_strided_slice %233 {offsets = [0, 32], sizes = [16, 16], strides = [1, 1]} : vector<16x48xf32> to vector<16x16xf32>
    %239 = arith.mulf %237, %218 : vector<16x16xf32>
    %240 = arith.mulf %236, %235 : vector<16x16xf32>
    %241 = arith.addf %239, %240 : vector<16x16xf32>
    %242 = math.tanh %241 : vector<16x16xf32>
    %243 = arith.mulf %238, %242 : vector<16x16xf32>
    %c3_i32 = arith.constant 3 : i32
    %c16_i32_46 = arith.constant 16 : i32
    %244 = arith.muli %c3_i32, %c16_i32_46 : i32
    %245 = tpu.assume_multiple %244, 16 : i32
    %246 = arith.index_cast %245 : i32 to index
    %c0_47 = arith.constant 0 : index
    %247 = vector.load %arg6[%246, %c0_47] : memref<192x64xf32, #tpu.memory_space<vmem>>, vector<16x64xf32>
    %248 = arith.truncf %243 : vector<16x16xf32> to vector<16x16xbf16>
    %cst_48 = arith.constant dense<0.000000e+00> : vector<16x64xf32>
    %249 = tpu.matmul %248, %172, %cst_48 {dimension_numbers = #tpu.dot_dimension_numbers<[1], [0], [0], [1], [0, 0, 1, 1], [], []>} : vector<16x16xbf16>, vector<16x64xbf16>, vector<16x64xf32> -> vector<16x64xf32>
    %250 = arith.addf %247, %249 : vector<16x64xf32>
    %251 = vector.extract_strided_slice %250 {offsets = [0, 0], sizes = [16, 48], strides = [1, 1]} : vector<16x64xf32> to vector<16x48xf32>
    %252 = arith.negf %251 : vector<16x48xf32>
    %253 = math.exp %252 : vector<16x48xf32>
    %cst_49 = arith.constant 1.000000e+00 : f32
    %254 = vector.broadcast %cst_49 : f32 to vector<16x48xf32>
    %255 = arith.addf %254, %253 : vector<16x48xf32>
    %256 = arith.divf %254, %255 : vector<16x48xf32>
    %257 = vector.extract_strided_slice %250 {offsets = [0, 48], sizes = [16, 16], strides = [1, 1]} : vector<16x64xf32> to vector<16x16xf32>
    %258 = math.tanh %257 : vector<16x16xf32>
    %259 = vector.extract_strided_slice %256 {offsets = [0, 0], sizes = [16, 16], strides = [1, 1]} : vector<16x48xf32> to vector<16x16xf32>
    %260 = vector.extract_strided_slice %256 {offsets = [0, 16], sizes = [16, 16], strides = [1, 1]} : vector<16x48xf32> to vector<16x16xf32>
    %261 = vector.extract_strided_slice %256 {offsets = [0, 32], sizes = [16, 16], strides = [1, 1]} : vector<16x48xf32> to vector<16x16xf32>
    %262 = arith.mulf %260, %241 : vector<16x16xf32>
    %263 = arith.mulf %259, %258 : vector<16x16xf32>
    %264 = arith.addf %262, %263 : vector<16x16xf32>
    %265 = math.tanh %264 : vector<16x16xf32>
    %266 = arith.mulf %261, %265 : vector<16x16xf32>
    %c4_i32 = arith.constant 4 : i32
    %c16_i32_50 = arith.constant 16 : i32
    %267 = arith.muli %c4_i32, %c16_i32_50 : i32
    %268 = tpu.assume_multiple %267, 16 : i32
    %269 = arith.index_cast %268 : i32 to index
    %c0_51 = arith.constant 0 : index
    %270 = vector.load %arg6[%269, %c0_51] : memref<192x64xf32, #tpu.memory_space<vmem>>, vector<16x64xf32>
    %271 = arith.truncf %266 : vector<16x16xf32> to vector<16x16xbf16>
    %cst_52 = arith.constant dense<0.000000e+00> : vector<16x64xf32>
    %272 = tpu.matmul %271, %172, %cst_52 {dimension_numbers = #tpu.dot_dimension_numbers<[1], [0], [0], [1], [0, 0, 1, 1], [], []>} : vector<16x16xbf16>, vector<16x64xbf16>, vector<16x64xf32> -> vector<16x64xf32>
    %273 = arith.addf %270, %272 : vector<16x64xf32>
    %274 = vector.extract_strided_slice %273 {offsets = [0, 0], sizes = [16, 48], strides = [1, 1]} : vector<16x64xf32> to vector<16x48xf32>
    %275 = arith.negf %274 : vector<16x48xf32>
    %276 = math.exp %275 : vector<16x48xf32>
    %cst_53 = arith.constant 1.000000e+00 : f32
    %277 = vector.broadcast %cst_53 : f32 to vector<16x48xf32>
    %278 = arith.addf %277, %276 : vector<16x48xf32>
    %279 = arith.divf %277, %278 : vector<16x48xf32>
    %280 = vector.extract_strided_slice %273 {offsets = [0, 48], sizes = [16, 16], strides = [1, 1]} : vector<16x64xf32> to vector<16x16xf32>
    %281 = math.tanh %280 : vector<16x16xf32>
    %282 = vector.extract_strided_slice %279 {offsets = [0, 0], sizes = [16, 16], strides = [1, 1]} : vector<16x48xf32> to vector<16x16xf32>
    %283 = vector.extract_strided_slice %279 {offsets = [0, 16], sizes = [16, 16], strides = [1, 1]} : vector<16x48xf32> to vector<16x16xf32>
    %284 = vector.extract_strided_slice %279 {offsets = [0, 32], sizes = [16, 16], strides = [1, 1]} : vector<16x48xf32> to vector<16x16xf32>
    %285 = arith.mulf %283, %264 : vector<16x16xf32>
    %286 = arith.mulf %282, %281 : vector<16x16xf32>
    %287 = arith.addf %285, %286 : vector<16x16xf32>
    %288 = math.tanh %287 : vector<16x16xf32>
    %289 = arith.mulf %284, %288 : vector<16x16xf32>
    %c5_i32 = arith.constant 5 : i32
    %c16_i32_54 = arith.constant 16 : i32
    %290 = arith.muli %c5_i32, %c16_i32_54 : i32
    %291 = tpu.assume_multiple %290, 16 : i32
    %292 = arith.index_cast %291 : i32 to index
    %c0_55 = arith.constant 0 : index
    %293 = vector.load %arg6[%292, %c0_55] : memref<192x64xf32, #tpu.memory_space<vmem>>, vector<16x64xf32>
    %294 = arith.truncf %289 : vector<16x16xf32> to vector<16x16xbf16>
    %cst_56 = arith.constant dense<0.000000e+00> : vector<16x64xf32>
    %295 = tpu.matmul %294, %172, %cst_56 {dimension_numbers = #tpu.dot_dimension_numbers<[1], [0], [0], [1], [0, 0, 1, 1], [], []>} : vector<16x16xbf16>, vector<16x64xbf16>, vector<16x64xf32> -> vector<16x64xf32>
    %296 = arith.addf %293, %295 : vector<16x64xf32>
    %297 = vector.extract_strided_slice %296 {offsets = [0, 0], sizes = [16, 48], strides = [1, 1]} : vector<16x64xf32> to vector<16x48xf32>
    %298 = arith.negf %297 : vector<16x48xf32>
    %299 = math.exp %298 : vector<16x48xf32>
    %cst_57 = arith.constant 1.000000e+00 : f32
    %300 = vector.broadcast %cst_57 : f32 to vector<16x48xf32>
    %301 = arith.addf %300, %299 : vector<16x48xf32>
    %302 = arith.divf %300, %301 : vector<16x48xf32>
    %303 = vector.extract_strided_slice %296 {offsets = [0, 48], sizes = [16, 16], strides = [1, 1]} : vector<16x64xf32> to vector<16x16xf32>
    %304 = math.tanh %303 : vector<16x16xf32>
    %305 = vector.extract_strided_slice %302 {offsets = [0, 0], sizes = [16, 16], strides = [1, 1]} : vector<16x48xf32> to vector<16x16xf32>
    %306 = vector.extract_strided_slice %302 {offsets = [0, 16], sizes = [16, 16], strides = [1, 1]} : vector<16x48xf32> to vector<16x16xf32>
    %307 = vector.extract_strided_slice %302 {offsets = [0, 32], sizes = [16, 16], strides = [1, 1]} : vector<16x48xf32> to vector<16x16xf32>
    %308 = arith.mulf %306, %287 : vector<16x16xf32>
    %309 = arith.mulf %305, %304 : vector<16x16xf32>
    %310 = arith.addf %308, %309 : vector<16x16xf32>
    %311 = math.tanh %310 : vector<16x16xf32>
    %312 = arith.mulf %307, %311 : vector<16x16xf32>
    %c6_i32 = arith.constant 6 : i32
    %c16_i32_58 = arith.constant 16 : i32
    %313 = arith.muli %c6_i32, %c16_i32_58 : i32
    %314 = tpu.assume_multiple %313, 16 : i32
    %315 = arith.index_cast %314 : i32 to index
    %c0_59 = arith.constant 0 : index
    %316 = vector.load %arg6[%315, %c0_59] : memref<192x64xf32, #tpu.memory_space<vmem>>, vector<16x64xf32>
    %317 = arith.truncf %312 : vector<16x16xf32> to vector<16x16xbf16>
    %cst_60 = arith.constant dense<0.000000e+00> : vector<16x64xf32>
    %318 = tpu.matmul %317, %172, %cst_60 {dimension_numbers = #tpu.dot_dimension_numbers<[1], [0], [0], [1], [0, 0, 1, 1], [], []>} : vector<16x16xbf16>, vector<16x64xbf16>, vector<16x64xf32> -> vector<16x64xf32>
    %319 = arith.addf %316, %318 : vector<16x64xf32>
    %320 = vector.extract_strided_slice %319 {offsets = [0, 0], sizes = [16, 48], strides = [1, 1]} : vector<16x64xf32> to vector<16x48xf32>
    %321 = arith.negf %320 : vector<16x48xf32>
    %322 = math.exp %321 : vector<16x48xf32>
    %cst_61 = arith.constant 1.000000e+00 : f32
    %323 = vector.broadcast %cst_61 : f32 to vector<16x48xf32>
    %324 = arith.addf %323, %322 : vector<16x48xf32>
    %325 = arith.divf %323, %324 : vector<16x48xf32>
    %326 = vector.extract_strided_slice %319 {offsets = [0, 48], sizes = [16, 16], strides = [1, 1]} : vector<16x64xf32> to vector<16x16xf32>
    %327 = math.tanh %326 : vector<16x16xf32>
    %328 = vector.extract_strided_slice %325 {offsets = [0, 0], sizes = [16, 16], strides = [1, 1]} : vector<16x48xf32> to vector<16x16xf32>
    %329 = vector.extract_strided_slice %325 {offsets = [0, 16], sizes = [16, 16], strides = [1, 1]} : vector<16x48xf32> to vector<16x16xf32>
    %330 = vector.extract_strided_slice %325 {offsets = [0, 32], sizes = [16, 16], strides = [1, 1]} : vector<16x48xf32> to vector<16x16xf32>
    %331 = arith.mulf %329, %310 : vector<16x16xf32>
    %332 = arith.mulf %328, %327 : vector<16x16xf32>
    %333 = arith.addf %331, %332 : vector<16x16xf32>
    %334 = math.tanh %333 : vector<16x16xf32>
    %335 = arith.mulf %330, %334 : vector<16x16xf32>
    %c7_i32 = arith.constant 7 : i32
    %c16_i32_62 = arith.constant 16 : i32
    %336 = arith.muli %c7_i32, %c16_i32_62 : i32
    %337 = tpu.assume_multiple %336, 16 : i32
    %338 = arith.index_cast %337 : i32 to index
    %c0_63 = arith.constant 0 : index
    %339 = vector.load %arg6[%338, %c0_63] : memref<192x64xf32, #tpu.memory_space<vmem>>, vector<16x64xf32>
    %340 = arith.truncf %335 : vector<16x16xf32> to vector<16x16xbf16>
    %cst_64 = arith.constant dense<0.000000e+00> : vector<16x64xf32>
    %341 = tpu.matmul %340, %172, %cst_64 {dimension_numbers = #tpu.dot_dimension_numbers<[1], [0], [0], [1], [0, 0, 1, 1], [], []>} : vector<16x16xbf16>, vector<16x64xbf16>, vector<16x64xf32> -> vector<16x64xf32>
    %342 = arith.addf %339, %341 : vector<16x64xf32>
    %343 = vector.extract_strided_slice %342 {offsets = [0, 0], sizes = [16, 48], strides = [1, 1]} : vector<16x64xf32> to vector<16x48xf32>
    %344 = arith.negf %343 : vector<16x48xf32>
    %345 = math.exp %344 : vector<16x48xf32>
    %cst_65 = arith.constant 1.000000e+00 : f32
    %346 = vector.broadcast %cst_65 : f32 to vector<16x48xf32>
    %347 = arith.addf %346, %345 : vector<16x48xf32>
    %348 = arith.divf %346, %347 : vector<16x48xf32>
    %349 = vector.extract_strided_slice %342 {offsets = [0, 48], sizes = [16, 16], strides = [1, 1]} : vector<16x64xf32> to vector<16x16xf32>
    %350 = math.tanh %349 : vector<16x16xf32>
    %351 = vector.extract_strided_slice %348 {offsets = [0, 0], sizes = [16, 16], strides = [1, 1]} : vector<16x48xf32> to vector<16x16xf32>
    %352 = vector.extract_strided_slice %348 {offsets = [0, 16], sizes = [16, 16], strides = [1, 1]} : vector<16x48xf32> to vector<16x16xf32>
    %353 = vector.extract_strided_slice %348 {offsets = [0, 32], sizes = [16, 16], strides = [1, 1]} : vector<16x48xf32> to vector<16x16xf32>
    %354 = arith.mulf %352, %333 : vector<16x16xf32>
    %355 = arith.mulf %351, %350 : vector<16x16xf32>
    %356 = arith.addf %354, %355 : vector<16x16xf32>
    %357 = math.tanh %356 : vector<16x16xf32>
    %358 = arith.mulf %353, %357 : vector<16x16xf32>
    %c8_i32 = arith.constant 8 : i32
    %c16_i32_66 = arith.constant 16 : i32
    %359 = arith.muli %c8_i32, %c16_i32_66 : i32
    %360 = tpu.assume_multiple %359, 16 : i32
    %361 = arith.index_cast %360 : i32 to index
    %c0_67 = arith.constant 0 : index
    %362 = vector.load %arg6[%361, %c0_67] : memref<192x64xf32, #tpu.memory_space<vmem>>, vector<16x64xf32>
    %363 = arith.truncf %358 : vector<16x16xf32> to vector<16x16xbf16>
    %cst_68 = arith.constant dense<0.000000e+00> : vector<16x64xf32>
    %364 = tpu.matmul %363, %172, %cst_68 {dimension_numbers = #tpu.dot_dimension_numbers<[1], [0], [0], [1], [0, 0, 1, 1], [], []>} : vector<16x16xbf16>, vector<16x64xbf16>, vector<16x64xf32> -> vector<16x64xf32>
    %365 = arith.addf %362, %364 : vector<16x64xf32>
    %366 = vector.extract_strided_slice %365 {offsets = [0, 0], sizes = [16, 48], strides = [1, 1]} : vector<16x64xf32> to vector<16x48xf32>
    %367 = arith.negf %366 : vector<16x48xf32>
    %368 = math.exp %367 : vector<16x48xf32>
    %cst_69 = arith.constant 1.000000e+00 : f32
    %369 = vector.broadcast %cst_69 : f32 to vector<16x48xf32>
    %370 = arith.addf %369, %368 : vector<16x48xf32>
    %371 = arith.divf %369, %370 : vector<16x48xf32>
    %372 = vector.extract_strided_slice %365 {offsets = [0, 48], sizes = [16, 16], strides = [1, 1]} : vector<16x64xf32> to vector<16x16xf32>
    %373 = math.tanh %372 : vector<16x16xf32>
    %374 = vector.extract_strided_slice %371 {offsets = [0, 0], sizes = [16, 16], strides = [1, 1]} : vector<16x48xf32> to vector<16x16xf32>
    %375 = vector.extract_strided_slice %371 {offsets = [0, 16], sizes = [16, 16], strides = [1, 1]} : vector<16x48xf32> to vector<16x16xf32>
    %376 = vector.extract_strided_slice %371 {offsets = [0, 32], sizes = [16, 16], strides = [1, 1]} : vector<16x48xf32> to vector<16x16xf32>
    %377 = arith.mulf %375, %356 : vector<16x16xf32>
    %378 = arith.mulf %374, %373 : vector<16x16xf32>
    %379 = arith.addf %377, %378 : vector<16x16xf32>
    %380 = math.tanh %379 : vector<16x16xf32>
    %381 = arith.mulf %376, %380 : vector<16x16xf32>
    %c9_i32 = arith.constant 9 : i32
    %c16_i32_70 = arith.constant 16 : i32
    %382 = arith.muli %c9_i32, %c16_i32_70 : i32
    %383 = tpu.assume_multiple %382, 16 : i32
    %384 = arith.index_cast %383 : i32 to index
    %c0_71 = arith.constant 0 : index
    %385 = vector.load %arg6[%384, %c0_71] : memref<192x64xf32, #tpu.memory_space<vmem>>, vector<16x64xf32>
    %386 = arith.truncf %381 : vector<16x16xf32> to vector<16x16xbf16>
    %cst_72 = arith.constant dense<0.000000e+00> : vector<16x64xf32>
    %387 = tpu.matmul %386, %172, %cst_72 {dimension_numbers = #tpu.dot_dimension_numbers<[1], [0], [0], [1], [0, 0, 1, 1], [], []>} : vector<16x16xbf16>, vector<16x64xbf16>, vector<16x64xf32> -> vector<16x64xf32>
    %388 = arith.addf %385, %387 : vector<16x64xf32>
    %389 = vector.extract_strided_slice %388 {offsets = [0, 0], sizes = [16, 48], strides = [1, 1]} : vector<16x64xf32> to vector<16x48xf32>
    %390 = arith.negf %389 : vector<16x48xf32>
    %391 = math.exp %390 : vector<16x48xf32>
    %cst_73 = arith.constant 1.000000e+00 : f32
    %392 = vector.broadcast %cst_73 : f32 to vector<16x48xf32>
    %393 = arith.addf %392, %391 : vector<16x48xf32>
    %394 = arith.divf %392, %393 : vector<16x48xf32>
    %395 = vector.extract_strided_slice %388 {offsets = [0, 48], sizes = [16, 16], strides = [1, 1]} : vector<16x64xf32> to vector<16x16xf32>
    %396 = math.tanh %395 : vector<16x16xf32>
    %397 = vector.extract_strided_slice %394 {offsets = [0, 0], sizes = [16, 16], strides = [1, 1]} : vector<16x48xf32> to vector<16x16xf32>
    %398 = vector.extract_strided_slice %394 {offsets = [0, 16], sizes = [16, 16], strides = [1, 1]} : vector<16x48xf32> to vector<16x16xf32>
    %399 = vector.extract_strided_slice %394 {offsets = [0, 32], sizes = [16, 16], strides = [1, 1]} : vector<16x48xf32> to vector<16x16xf32>
    %400 = arith.mulf %398, %379 : vector<16x16xf32>
    %401 = arith.mulf %397, %396 : vector<16x16xf32>
    %402 = arith.addf %400, %401 : vector<16x16xf32>
    %403 = math.tanh %402 : vector<16x16xf32>
    %404 = arith.mulf %399, %403 : vector<16x16xf32>
    %c10_i32 = arith.constant 10 : i32
    %c16_i32_74 = arith.constant 16 : i32
    %405 = arith.muli %c10_i32, %c16_i32_74 : i32
    %406 = tpu.assume_multiple %405, 16 : i32
    %407 = arith.index_cast %406 : i32 to index
    %c0_75 = arith.constant 0 : index
    %408 = vector.load %arg6[%407, %c0_75] : memref<192x64xf32, #tpu.memory_space<vmem>>, vector<16x64xf32>
    %409 = arith.truncf %404 : vector<16x16xf32> to vector<16x16xbf16>
    %cst_76 = arith.constant dense<0.000000e+00> : vector<16x64xf32>
    %410 = tpu.matmul %409, %172, %cst_76 {dimension_numbers = #tpu.dot_dimension_numbers<[1], [0], [0], [1], [0, 0, 1, 1], [], []>} : vector<16x16xbf16>, vector<16x64xbf16>, vector<16x64xf32> -> vector<16x64xf32>
    %411 = arith.addf %408, %410 : vector<16x64xf32>
    %412 = vector.extract_strided_slice %411 {offsets = [0, 0], sizes = [16, 48], strides = [1, 1]} : vector<16x64xf32> to vector<16x48xf32>
    %413 = arith.negf %412 : vector<16x48xf32>
    %414 = math.exp %413 : vector<16x48xf32>
    %cst_77 = arith.constant 1.000000e+00 : f32
    %415 = vector.broadcast %cst_77 : f32 to vector<16x48xf32>
    %416 = arith.addf %415, %414 : vector<16x48xf32>
    %417 = arith.divf %415, %416 : vector<16x48xf32>
    %418 = vector.extract_strided_slice %411 {offsets = [0, 48], sizes = [16, 16], strides = [1, 1]} : vector<16x64xf32> to vector<16x16xf32>
    %419 = math.tanh %418 : vector<16x16xf32>
    %420 = vector.extract_strided_slice %417 {offsets = [0, 0], sizes = [16, 16], strides = [1, 1]} : vector<16x48xf32> to vector<16x16xf32>
    %421 = vector.extract_strided_slice %417 {offsets = [0, 16], sizes = [16, 16], strides = [1, 1]} : vector<16x48xf32> to vector<16x16xf32>
    %422 = vector.extract_strided_slice %417 {offsets = [0, 32], sizes = [16, 16], strides = [1, 1]} : vector<16x48xf32> to vector<16x16xf32>
    %423 = arith.mulf %421, %402 : vector<16x16xf32>
    %424 = arith.mulf %420, %419 : vector<16x16xf32>
    %425 = arith.addf %423, %424 : vector<16x16xf32>
    %426 = math.tanh %425 : vector<16x16xf32>
    %427 = arith.mulf %422, %426 : vector<16x16xf32>
    %c11_i32 = arith.constant 11 : i32
    %c16_i32_78 = arith.constant 16 : i32
    %428 = arith.muli %c11_i32, %c16_i32_78 : i32
    %429 = tpu.assume_multiple %428, 16 : i32
    %430 = arith.index_cast %429 : i32 to index
    %c0_79 = arith.constant 0 : index
    %431 = vector.load %arg6[%430, %c0_79] : memref<192x64xf32, #tpu.memory_space<vmem>>, vector<16x64xf32>
    %432 = arith.truncf %427 : vector<16x16xf32> to vector<16x16xbf16>
    %cst_80 = arith.constant dense<0.000000e+00> : vector<16x64xf32>
    %433 = tpu.matmul %432, %172, %cst_80 {dimension_numbers = #tpu.dot_dimension_numbers<[1], [0], [0], [1], [0, 0, 1, 1], [], []>} : vector<16x16xbf16>, vector<16x64xbf16>, vector<16x64xf32> -> vector<16x64xf32>
    %434 = arith.addf %431, %433 : vector<16x64xf32>
    %435 = vector.extract_strided_slice %434 {offsets = [0, 0], sizes = [16, 48], strides = [1, 1]} : vector<16x64xf32> to vector<16x48xf32>
    %436 = arith.negf %435 : vector<16x48xf32>
    %437 = math.exp %436 : vector<16x48xf32>
    %cst_81 = arith.constant 1.000000e+00 : f32
    %438 = vector.broadcast %cst_81 : f32 to vector<16x48xf32>
    %439 = arith.addf %438, %437 : vector<16x48xf32>
    %440 = arith.divf %438, %439 : vector<16x48xf32>
    %441 = vector.extract_strided_slice %434 {offsets = [0, 48], sizes = [16, 16], strides = [1, 1]} : vector<16x64xf32> to vector<16x16xf32>
    %442 = math.tanh %441 : vector<16x16xf32>
    %443 = vector.extract_strided_slice %440 {offsets = [0, 0], sizes = [16, 16], strides = [1, 1]} : vector<16x48xf32> to vector<16x16xf32>
    %444 = vector.extract_strided_slice %440 {offsets = [0, 16], sizes = [16, 16], strides = [1, 1]} : vector<16x48xf32> to vector<16x16xf32>
    %445 = vector.extract_strided_slice %440 {offsets = [0, 32], sizes = [16, 16], strides = [1, 1]} : vector<16x48xf32> to vector<16x16xf32>
    %446 = arith.mulf %444, %425 : vector<16x16xf32>
    %447 = arith.mulf %443, %442 : vector<16x16xf32>
    %448 = arith.addf %446, %447 : vector<16x16xf32>
    %449 = math.tanh %448 : vector<16x16xf32>
    %450 = arith.mulf %445, %449 : vector<16x16xf32>
    %c12_i32 = arith.constant 12 : i32
    %c0_82 = arith.constant 0 : index
    %c0_83 = arith.constant 0 : index
    %451 = vector.load %arg5[%c0_82, %c0_83] : memref<16x16xf32, #tpu.memory_space<vmem>>, vector<16x16xf32>
    tpu.vector_store %arg5[%c0_82, %c0_83], %450 {strides = array<i32>} : memref<16x16xf32, #tpu.memory_space<vmem>>, vector<16x16xf32>,
    return
  }
}

</mosaic_0001>

<llo_original>
// kernel: contrastive_model_forward.1
$region0: #{contrastive_model_forward.1}
  #allocation0 [shape = 'u32[]', space=smem, size = 0x4, offset = 0x4, fixed_abs, tag = 'smem constant byte address 0x4 - core index']
  #allocation1 [shape = 'u32[72,128]{1,0:T(1,128)}', space=vmem, size = 0x9000, scoped, tag = 'internal scratch']
  #allocation2 [shape = 'f32[192,64]{1,0:T(8,128)}', space=vmem, size = 0x18000, scoped, tag = 'scratch operand']
  %s0 = inlined_call_operand.hbm [shape: f32[8,12], index: 0, kind: input, shape index: {}]
  %s1 = inlined_call_operand.hbm [shape: f32[8,12], index: 1, kind: input, shape index: {}]
  %s2 = inlined_call_operand.vmem [shape: f32[1,64], index: 2, kind: input, shape index: {}]
  %s3 = inlined_call_operand.hbm [shape: bf16[16,64], index: 3, kind: input, shape index: {}]
  %s4 = inlined_call_operand.vmem [shape: f32[1,64], index: 4, kind: input, shape index: {}]
  %s5 = inlined_call_operand.vmem [shape: f32[16,16], index: 5, kind: output, shape index: {}]
  %s6 = sld [smem:[#allocation0]]
  $region42: #{contrastive_model_forward.1} parent=0
    _
  %s8 = ssub.s32 1, %s6
  %s9 = scalar_select 0, %s8, %s6
  $region1: #{contrastive_model_forward.1} parent=0
    #allocation3 [shape = 'u8[4096]{0}', space=vmem, size = 0x1000, scoped, tag = 'input window, operand 0, single buffered']
    #allocation4 [shape = 's32[1]{0}', space=sflag, size = 0x4, scoped, tag = 'scoped memory for contrastive_model_forward.1']
    #allocation5 [shape = 'u8[4096]{0}', space=vmem, size = 0x1000, scoped, tag = 'input window, operand 1, single buffered']
    #allocation6 [shape = 's32[1]{0}', space=sflag, size = 0x4, scoped, tag = 'scoped memory for contrastive_model_forward.1']
    #allocation7 [shape = 'u8[4096]{0}', space=vmem, size = 0x1000, scoped, tag = 'input window, operand 3, single buffered']
    %10 = vsyncpa [#allocation4], 0
    %11 = vsyncpa [#allocation6], 0
    // Predicated region
    $region2: #{contrastive_model_forward.1} parent=1 // pred_check
      _
    $region3: #{contrastive_model_forward.1} parent=1 // pred_check_branch
      %13 = sbr.rel (0) target = $region5
    $region4: #{contrastive_model_forward.1} parent=1 // pred_region
      %15 = vsyncadd [#allocation4], 0
      %s17 = sshll.u32 %s0, 4
      %s18 = int_to_ptr.hbm [resolvable:$true] %s17
      %s19 = sshll.u32 [#allocation3], 4
      %s20 = int_to_ptr.vmem [resolvable:$true] %s19
      %22 = dma.hbm_to_vmem [thread:$0]  %s18, 128, %s20, [#allocation4]
    $region5: #{contrastive_model_forward.1} parent=1 // pred_fallthru
      _
    // Predicated region
    $region6: #{contrastive_model_forward.1} parent=1 // pred_check
      _
    $region7: #{contrastive_model_forward.1} parent=1 // pred_check_branch
      %24 = sbr.rel (0) target = $region9
    $region8: #{contrastive_model_forward.1} parent=1 // pred_region
      %26 = vsyncadd [#allocation6], 0
      %s28 = sshll.u32 %s1, 4
      %s29 = int_to_ptr.hbm [resolvable:$true] %s28
      %s30 = sshll.u32 [#allocation5], 4
      %s31 = int_to_ptr.vmem [resolvable:$true] %s30
      %33 = dma.hbm_to_vmem [thread:$0]  %s29, 128, %s31, [#allocation6]
    $region9: #{contrastive_model_forward.1} parent=1 // pred_fallthru
      _
    // Predicated region
    $region10: #{contrastive_model_forward.1} parent=1 // pred_check
      _
    $region11: #{contrastive_model_forward.1} parent=1 // pred_check_branch
      %35 = sbr.rel (0) target = $region13
    $region12: #{contrastive_model_forward.1} parent=1 // pred_region
      _
    $region13: #{contrastive_model_forward.1} parent=1 // pred_fallthru
      _
    // Predicated region
    $region14: #{contrastive_model_forward.1} parent=1 // pred_check
      _
    $region15: #{contrastive_model_forward.1} parent=1 // pred_check_branch
      %37 = sbr.rel (0) target = $region17
    $region16: #{contrastive_model_forward.1} parent=1 // pred_region
      %39 = vsyncadd [#allocation6], 0
      %s40 = sshll.u32 %s3, 4
      %s41 = int_to_ptr.hbm [resolvable:$true] %s40
      %s42 = sshll.u32 [#allocation7], 4
      %s43 = int_to_ptr.vmem [resolvable:$true] %s42
      %48 = dma.hbm_to_vmem [thread:$0]  %s41, 128, %s43, [#allocation6], 64, 64, 4
    $region17: #{contrastive_model_forward.1} parent=1 // pred_fallthru
      _
    // Predicated region
    $region18: #{contrastive_model_forward.1} parent=1 // pred_check
      _
    $region19: #{contrastive_model_forward.1} parent=1 // pred_check_branch
      %50 = sbr.rel (0) target = $region21
    $region20: #{contrastive_model_forward.1} parent=1 // pred_region
      _
    $region21: #{contrastive_model_forward.1} parent=1 // pred_fallthru
      _
    // Predicated region
    $region22: #{contrastive_model_forward.1} parent=1 // pred_check
      _
    $region23: #{contrastive_model_forward.1} parent=1 // pred_check_branch
      %52 = sbr.rel (0) target = $region25
    $region24: #{contrastive_model_forward.1} parent=1 // pred_region
      %54 = dma.done [#allocation4], 128
    $region25: #{contrastive_model_forward.1} parent=1 // pred_fallthru
      _
    // Predicated region
    $region26: #{contrastive_model_forward.1} parent=1 // pred_check
      _
    $region27: #{contrastive_model_forward.1} parent=1 // pred_check_branch
      %56 = sbr.rel (0) target = $region29
    $region28: #{contrastive_model_forward.1} parent=1 // pred_region
      %58 = dma.done [#allocation6], 128
    $region29: #{contrastive_model_forward.1} parent=1 // pred_fallthru
      _
    // Predicated region
    $region30: #{contrastive_model_forward.1} parent=1 // pred_check
      _
    $region31: #{contrastive_model_forward.1} parent=1 // pred_check_branch
      %60 = sbr.rel (0) target = $region33
    $region32: #{contrastive_model_forward.1} parent=1 // pred_region
      %62 = dma.done [#allocation6], 128
    $region33: #{contrastive_model_forward.1} parent=1 // pred_fallthru
      _
    %v64 = vld [vmem:[#allocation3] sm:$0xff]
    %v65 = vld [vmem:[#allocation5] sm:$0xff]
    %v66 = vld [vmem:[%s2] sm:$0x1]
    %v67 = vld [vmem:[%s4] sm:$0x1]
    %69 = vset.pattern.permute.xlu0 0
    %70 = vperm.xlu0 %69, %v64
    %v71 = vpop.permute.xlu0 %70
    %v74 = vperm.slane %v66, 0
    %v76 = vmul.f32 %v71, %v74
    %v78 = vperm.slane %v67, 0
    %v80 = vadd.f32 %v76, %v78
    %vm81 = vcmask 523264
    %82 = vst.msk [vmem:[#allocation2] sm:$0xff] %vm81, %v80
    %84 = vset.pattern.permute.xlu0 0
    %85 = vperm.xlu0 %84, %v65
    %v86 = vpop.permute.xlu0 %85
    %v88 = vmul.f32 %v86, %v74
    %v89 = vadd.f32 %v88, %v78
    %90 = vst.msk [vmem:[#allocation2 + $0x8] sm:$0xff] %vm81, %v89
    %91 = vset.pattern.permute.xlu0 1
    %92 = vperm.xlu0 %91, %v64
    %v93 = vpop.permute.xlu0 %92
    %v95 = vmul.f32 %v93, %v74
    %v96 = vadd.f32 %v95, %v78
    %97 = vst.msk [vmem:[#allocation2 + $0x10] sm:$0xff] %vm81, %v96
    %98 = vset.pattern.permute.xlu0 1
    %99 = vperm.xlu0 %98, %v65
    %v100 = vpop.permute.xlu0 %99
    %v102 = vmul.f32 %v100, %v74
    %v103 = vadd.f32 %v102, %v78
    %104 = vst.msk [vmem:[#allocation2 + $0x18] sm:$0xff] %vm81, %v103
    %105 = vset.pattern.permute.xlu0 2
    %106 = vperm.xlu0 %105, %v64
    %v107 = vpop.permute.xlu0 %106
    %v109 = vmul.f32 %v107, %v74
    %v110 = vadd.f32 %v109, %v78
    %111 = vst.msk [vmem:[#allocation2 + $0x20] sm:$0xff] %vm81, %v110
    %112 = vset.pattern.permute.xlu0 2
    %113 = vperm.xlu0 %112, %v65
    %v114 = vpop.permute.xlu0 %113
    %v116 = vmul.f32 %v114, %v74
    %v117 = vadd.f32 %v116, %v78
    %118 = vst.msk [vmem:[#allocation2 + $0x28] sm:$0xff] %vm81, %v117
    %119 = vset.pattern.permute.xlu0 3
    %120 = vperm.xlu0 %119, %v64
    %v121 = vpop.permute.xlu0 %120
    %v123 = vmul.f32 %v121, %v74
    %v124 = vadd.f32 %v123, %v78
    %125 = vst.msk [vmem:[#allocation2 + $0x30] sm:$0xff] %vm81, %v124
    %126 = vset.pattern.permute.xlu0 3
    %127 = vperm.xlu0 %126, %v65
    %v128 = vpop.permute.xlu0 %127
    %v130 = vmul.f32 %v128, %v74
    %v131 = vadd.f32 %v130, %v78
    %132 = vst.msk [vmem:[#allocation2 + $0x38] sm:$0xff] %vm81, %v131
    %133 = vset.pattern.permute.xlu0 4
    %134 = vperm.xlu0 %133, %v64
    %v135 = vpop.permute.xlu0 %134
    %v137 = vmul.f32 %v135, %v74
    %v138 = vadd.f32 %v137, %v78
    %139 = vst.msk [vmem:[#allocation2 + $0x40] sm:$0xff] %vm81, %v138
    %140 = vset.pattern.permute.xlu0 4
    %141 = vperm.xlu0 %140, %v65
    %v142 = vpop.permute.xlu0 %141
    %v144 = vmul.f32 %v142, %v74
    %v145 = vadd.f32 %v144, %v78
    %146 = vst.msk [vmem:[#allocation2 + $0x48] sm:$0xff] %vm81, %v145
    %147 = vset.pattern.permute.xlu0 5
    %148 = vperm.xlu0 %147, %v64
    %v149 = vpop.permute.xlu0 %148
    %v151 = vmul.f32 %v149, %v74
    %v152 = vadd.f32 %v151, %v78
    %153 = vst.msk [vmem:[#allocation2 + $0x50] sm:$0xff] %vm81, %v152
    %154 = vset.pattern.permute.xlu0 5
    %155 = vperm.xlu0 %154, %v65
    %v156 = vpop.permute.xlu0 %155
    %v158 = vmul.f32 %v156, %v74
    %v159 = vadd.f32 %v158, %v78
    %160 = vst.msk [vmem:[#allocation2 + $0x58] sm:$0xff] %vm81, %v159
    %161 = vset.pattern.permute.xlu0 6
    %162 = vperm.xlu0 %161, %v64
    %v163 = vpop.permute.xlu0 %162
    %v165 = vmul.f32 %v163, %v74
    %v166 = vadd.f32 %v165, %v78
    %167 = vst.msk [vmem:[#allocation2 + $0x60] sm:$0xff] %vm81, %v166
    %168 = vset.pattern.permute.xlu0 6
    %169 = vperm.xlu0 %168, %v65
    %v170 = vpop.permute.xlu0 %169
    %v172 = vmul.f32 %v170, %v74
    %v173 = vadd.f32 %v172, %v78
    %174 = vst.msk [vmem:[#allocation2 + $0x68] sm:$0xff] %vm81, %v173
    %175 = vset.pattern.permute.xlu0 7
    %176 = vperm.xlu0 %175, %v64
    %v177 = vpop.permute.xlu0 %176
    %v179 = vmul.f32 %v177, %v74
    %v180 = vadd.f32 %v179, %v78
    %181 = vst.msk [vmem:[#allocation2 + $0x70] sm:$0xff] %vm81, %v180
    %182 = vset.pattern.permute.xlu0 7
    %183 = vperm.xlu0 %182, %v65
    %v184 = vpop.permute.xlu0 %183
    %v186 = vmul.f32 %v184, %v74
    %v187 = vadd.f32 %v186, %v78
    %188 = vst.msk [vmem:[#allocation2 + $0x78] sm:$0xff] %vm81, %v187
    %189 = vset.pattern.permute.xlu0 8
    %190 = vperm.xlu0 %189, %v64
    %v191 = vpop.permute.xlu0 %190
    %v193 = vmul.f32 %v191, %v74
    %v194 = vadd.f32 %v193, %v78
    %195 = vst.msk [vmem:[#allocation2 + $0x80] sm:$0xff] %vm81, %v194
    %196 = vset.pattern.permute.xlu0 8
    %197 = vperm.xlu0 %196, %v65
    %v198 = vpop.permute.xlu0 %197
    %v200 = vmul.f32 %v198, %v74
    %v201 = vadd.f32 %v200, %v78
    %202 = vst.msk [vmem:[#allocation2 + $0x88] sm:$0xff] %vm81, %v201
    %203 = vset.pattern.permute.xlu0 9
    %204 = vperm.xlu0 %203, %v64
    %v205 = vpop.permute.xlu0 %204
    %v207 = vmul.f32 %v205, %v74
    %v208 = vadd.f32 %v207, %v78
    %209 = vst.msk [vmem:[#allocation2 + $0x90] sm:$0xff] %vm81, %v208
    %210 = vset.pattern.permute.xlu0 9
    %211 = vperm.xlu0 %210, %v65
    %v212 = vpop.permute.xlu0 %211
    %v214 = vmul.f32 %v212, %v74
    %v215 = vadd.f32 %v214, %v78
    %216 = vst.msk [vmem:[#allocation2 + $0x98] sm:$0xff] %vm81, %v215
    %217 = vset.pattern.permute.xlu0 10
    %218 = vperm.xlu0 %217, %v64
    %v219 = vpop.permute.xlu0 %218
    %v221 = vmul.f32 %v219, %v74
    %v222 = vadd.f32 %v221, %v78
    %223 = vst.msk [vmem:[#allocation2 + $0xa0] sm:$0xff] %vm81, %v222
    %224 = vset.pattern.permute.xlu0 10
    %225 = vperm.xlu0 %224, %v65
    %v226 = vpop.permute.xlu0 %225
    %v228 = vmul.f32 %v226, %v74
    %v229 = vadd.f32 %v228, %v78
    %230 = vst.msk [vmem:[#allocation2 + $0xa8] sm:$0xff] %vm81, %v229
    %231 = vset.pattern.permute.xlu0 11
    %232 = vperm.xlu0 %231, %v64
    %v233 = vpop.permute.xlu0 %232
    %v235 = vmul.f32 %v233, %v74
    %v236 = vadd.f32 %v235, %v78
    %237 = vst.msk [vmem:[#allocation2 + $0xb0] sm:$0xff] %vm81, %v236
    %238 = vset.pattern.permute.xlu0 11
    %239 = vperm.xlu0 %238, %v65
    %v240 = vpop.permute.xlu0 %239
    %v242 = vmul.f32 %v240, %v74
    %v243 = vadd.f32 %v242, %v78
    %244 = vst.msk [vmem:[#allocation2 + $0xb8] sm:$0xff] %vm81, %v243
    %v245 = vld [vmem:[#allocation7] sm:$0xf]
    %v246 = vld [vmem:[#allocation7 + $0x4] sm:$0xf]
    %v247 = vld [vmem:[#allocation2] sm:$0xff]
    %v248 = vld [vmem:[#allocation2 + $0x8] sm:$0xff]
    %v251 = vunpack.c.l.b16 %v245
    %v252 = vunpack.c.l.b16 %v246
    %v253 = vpack.c.b16 %v252, %v251
    %vm255 = vcmask 130048
    %v257 = vsel %vm255, 0, 0
    %259 = vmatpush.bf16.msra.mxu0 0
    %260 = vmatpush.bf16.msra.mxu0 0
    %261 = vmatpush.bf16.msra.mxu0 0
    %262 = vmatpush.bf16.msra.mxu0 0
    %263 = vmatpush.bf16.msra.mxu0 0
    %264 = vmatpush.bf16.msra.mxu0 0
    %265 = vmatpush.bf16.msra.mxu0 0
    %266 = vmatpush.bf16.msra.mxu0 %v253
    %267 = vmatmul.bf16.gmra.mxu0 %v257
    %v268 = vpop.f32.mrf.mxu0
    %v269 = vadd.f32 0.0, %v268
    %v270 = vpop.f32.mrf.mxu0
    %v271 = vadd.f32 0.0, %v270
    %272 = vdwg.mxu0
    %v273 = vadd.f32 %v247, %v269
    %v274 = vadd.f32 %v248, %v271
    %v275 = vxor.u32 %v273, 2147483648
    %v276 = vxor.u32 %v274, 2147483648
    %v277 = vmul.f32 %v275, 1.442695
    %v278 = vpow.pop %v277
    %v279 = vmul.f32 %v276, 1.442695
    %v280 = vpow.pop %v279
    %v281 = vadd.f32 %v278, 1.0
    %v282 = vadd.f32 %v280, 1.0
    %v283 = vrcp.pop %v281
    %v284 = vmul.f32 %v281, %v283
    %v285 = vsub.f32 1.0, %v284
    %v286 = vmul.f32 %v283, %v285
    %v287 = vadd.f32 %v283, %v286
    %vm288 = vweird.f32 %v281
    %vm289 = vweird.f32 %v283
    %vm290 = vmor %vm288, %vm289
    %v291 = vsel %vm290, %v283, %v287
    %v292 = vand.u32 2147483647, %v281
    %vm293 = vcmp.eq.f32.partialorder %v292, 8.507059e+37
    %v294 = vand.u32 %v281, 2147483648
    %v295 = vor.u32 1.1754944e-38, %v294
    %v296 = vsel %vm293, %v295, %v291
    %v297 = vmul.f32 1.0, %v296
    %v298 = vrcp.pop %v282
    %v299 = vmul.f32 %v282, %v298
    %v300 = vsub.f32 1.0, %v299
    %v301 = vmul.f32 %v298, %v300
    %v302 = vadd.f32 %v298, %v301
    %vm303 = vweird.f32 %v282
    %vm304 = vweird.f32 %v298
    %vm305 = vmor %vm303, %vm304
    %v306 = vsel %vm305, %v298, %v302
    %v307 = vand.u32 2147483647, %v282
    %vm308 = vcmp.eq.f32.partialorder %v307, 8.507059e+37
    %v309 = vand.u32 %v282, 2147483648
    %v310 = vor.u32 1.1754944e-38, %v309
    %v311 = vsel %vm308, %v310, %v306
    %v312 = vmul.f32 1.0, %v311
    %v313 = vtanh.pop %v273
    %v314 = vtanh.pop %v274
    %v315 = vmul.f32 %v297, 0.0
    %v316 = vmul.f32 %v312, 0.0
    %319 = vrot.lane.b32.xlu0 %v313, 80
    %v320 = vpop.permute.xlu0 %319
    %321 = vrot.lane.b32.xlu0 %v314, 80
    %v322 = vpop.permute.xlu0 %321
    %v325 = vmul.f32 %v297, %v320
    %v326 = vmul.f32 %v312, %v322
    %329 = vrot.lane.b32.xlu0 %v325, 16
    %v330 = vpop.permute.xlu0 %329
    %331 = vrot.lane.b32.xlu0 %v326, 16
    %v332 = vpop.permute.xlu0 %331
    %v335 = vadd.f32 %v315, %v330
    %v336 = vadd.f32 %v316, %v332
    %v337 = vtanh.pop %v335
    %v338 = vtanh.pop %v336
    %341 = vrot.lane.b32.xlu0 %v337, 16
    %v342 = vpop.permute.xlu0 %341
    %343 = vrot.lane.b32.xlu0 %v338, 16
    %v344 = vpop.permute.xlu0 %343
    %v347 = vmul.f32 %v297, %v342
    %v348 = vmul.f32 %v312, %v344
    %s349 = scalar_lea.vmem [#allocation2], 16
    %v350 = vld [vmem:[%s349] sm:$0xff]
    %v351 = vld [vmem:[%s349 + $0x8] sm:$0xff]
    %v352 = vpack.c.bf16 %v348, %v347
    %354 = vrot.lane.b32.xlu0 %v352, 96
    %v355 = vpop.permute.xlu0 %354
    %v357 = vsel %vm255, %v355, 0
    %359 = vmatpush.bf16.msra.mxu0 0
    %360 = vmatpush.bf16.msra.mxu0 0
    %361 = vmatpush.bf16.msra.mxu0 0
    %362 = vmatpush.bf16.msra.mxu0 0
    %363 = vmatpush.bf16.msra.mxu0 0
    %364 = vmatpush.bf16.msra.mxu0 0
    %365 = vmatpush.bf16.msra.mxu0 0
    %366 = vmatpush.bf16.msra.mxu0 %v253
    %367 = vmatmul.bf16.gmra.mxu0 %v357
    %v368 = vpop.f32.mrf.mxu0
    %v369 = vadd.f32 0.0, %v368
    %v370 = vpop.f32.mrf.mxu0
    %v371 = vadd.f32 0.0, %v370
    %372 = vdwg.mxu0
    %v373 = vadd.f32 %v350, %v369
    %v374 = vadd.f32 %v351, %v371
    %v375 = vxor.u32 %v373, 2147483648
    %v376 = vxor.u32 %v374, 2147483648
    %v377 = vmul.f32 %v375, 1.442695
    %v378 = vpow.pop %v377
    %v379 = vmul.f32 %v376, 1.442695
    %v380 = vpow.pop %v379
    %v381 = vadd.f32 %v378, 1.0
    %v382 = vadd.f32 %v380, 1.0
    %v383 = vrcp.pop %v381
    %v384 = vmul.f32 %v381, %v383
    %v385 = vsub.f32 1.0, %v384
    %v386 = vmul.f32 %v383, %v385
    %v387 = vadd.f32 %v383, %v386
    %vm388 = vweird.f32 %v381
    %vm389 = vweird.f32 %v383
    %vm390 = vmor %vm388, %vm389
    %v391 = vsel %vm390, %v383, %v387
    %v392 = vand.u32 2147483647, %v381
    %vm393 = vcmp.eq.f32.partialorder %v392, 8.507059e+37
    %v394 = vand.u32 %v381, 2147483648
    %v395 = vor.u32 1.1754944e-38, %v394
    %v396 = vsel %vm393, %v395, %v391
    %v397 = vmul.f32 1.0, %v396
    %v398 = vrcp.pop %v382
    %v399 = vmul.f32 %v382, %v398
    %v400 = vsub.f32 1.0, %v399
    %v401 = vmul.f32 %v398, %v400
    %v402 = vadd.f32 %v398, %v401
    %vm403 = vweird.f32 %v382
    %vm404 = vweird.f32 %v398
    %vm405 = vmor %vm403, %vm404
    %v406 = vsel %vm405, %v398, %v402
    %v407 = vand.u32 2147483647, %v382
    %vm408 = vcmp.eq.f32.partialorder %v407, 8.507059e+37
    %v409 = vand.u32 %v382, 2147483648
    %v410 = vor.u32 1.1754944e-38, %v409
    %v411 = vsel %vm408, %v410, %v406
    %v412 = vmul.f32 1.0, %v411
    %v413 = vtanh.pop %v373
    %v414 = vtanh.pop %v374
    %v415 = vmul.f32 %v397, %v335
    %v416 = vmul.f32 %v412, %v336
    %419 = vrot.lane.b32.xlu0 %v413, 80
    %v420 = vpop.permute.xlu0 %419
    %421 = vrot.lane.b32.xlu0 %v414, 80
    %v422 = vpop.permute.xlu0 %421
    %v425 = vmul.f32 %v397, %v420
    %v426 = vmul.f32 %v412, %v422
    %429 = vrot.lane.b32.xlu0 %v425, 16
    %v430 = vpop.permute.xlu0 %429
    %431 = vrot.lane.b32.xlu0 %v426, 16
    %v432 = vpop.permute.xlu0 %431
    %v435 = vadd.f32 %v415, %v430
    %v436 = vadd.f32 %v416, %v432
    %v437 = vtanh.pop %v435
    %v438 = vtanh.pop %v436
    %441 = vrot.lane.b32.xlu0 %v437, 16
    %v442 = vpop.permute.xlu0 %441
    %443 = vrot.lane.b32.xlu0 %v438, 16
    %v444 = vpop.permute.xlu0 %443
    %v447 = vmul.f32 %v397, %v442
    %v448 = vmul.f32 %v412, %v444
    %s449 = scalar_lea.vmem [#allocation2], 32
    %v450 = vld [vmem:[%s449] sm:$0xff]
    %v451 = vld [vmem:[%s449 + $0x8] sm:$0xff]
    %v452 = vpack.c.bf16 %v448, %v447
    %454 = vrot.lane.b32.xlu0 %v452, 96
    %v455 = vpop.permute.xlu0 %454
    %v457 = vsel %vm255, %v455, 0
    %459 = vmatpush.bf16.msra.mxu0 0
    %460 = vmatpush.bf16.msra.mxu0 0
    %461 = vmatpush.bf16.msra.mxu0 0
    %462 = vmatpush.bf16.msra.mxu0 0
    %463 = vmatpush.bf16.msra.mxu0 0
    %464 = vmatpush.bf16.msra.mxu0 0
    %465 = vmatpush.bf16.msra.mxu0 0
    %466 = vmatpush.bf16.msra.mxu0 %v253
    %467 = vmatmul.bf16.gmra.mxu0 %v457
    %v468 = vpop.f32.mrf.mxu0
    %v469 = vadd.f32 0.0, %v468
    %v470 = vpop.f32.mrf.mxu0
    %v471 = vadd.f32 0.0, %v470
    %472 = vdwg.mxu0
    %v473 = vadd.f32 %v450, %v469
    %v474 = vadd.f32 %v451, %v471
    %v475 = vxor.u32 %v473, 2147483648
    %v476 = vxor.u32 %v474, 2147483648
    %v477 = vmul.f32 %v475, 1.442695
    %v478 = vpow.pop %v477
    %v479 = vmul.f32 %v476, 1.442695
    %v480 = vpow.pop %v479
    %v481 = vadd.f32 %v478, 1.0
    %v482 = vadd.f32 %v480, 1.0
    %v483 = vrcp.pop %v481
    %v484 = vmul.f32 %v481, %v483
    %v485 = vsub.f32 1.0, %v484
    %v486 = vmul.f32 %v483, %v485
    %v487 = vadd.f32 %v483, %v486
    %vm488 = vweird.f32 %v481
    %vm489 = vweird.f32 %v483
    %vm490 = vmor %vm488, %vm489
    %v491 = vsel %vm490, %v483, %v487
    %v492 = vand.u32 2147483647, %v481
    %vm493 = vcmp.eq.f32.partialorder %v492, 8.507059e+37
    %v494 = vand.u32 %v481, 2147483648
    %v495 = vor.u32 1.1754944e-38, %v494
    %v496 = vsel %vm493, %v495, %v491
    %v497 = vmul.f32 1.0, %v496
    %v498 = vrcp.pop %v482
    %v499 = vmul.f32 %v482, %v498
    %v500 = vsub.f32 1.0, %v499
    %v501 = vmul.f32 %v498, %v500
    %v502 = vadd.f32 %v498, %v501
    %vm503 = vweird.f32 %v482
    %vm504 = vweird.f32 %v498
    %vm505 = vmor %vm503, %vm504
    %v506 = vsel %vm505, %v498, %v502
    %v507 = vand.u32 2147483647, %v482
    %vm508 = vcmp.eq.f32.partialorder %v507, 8.507059e+37
    %v509 = vand.u32 %v482, 2147483648
    %v510 = vor.u32 1.1754944e-38, %v509
    %v511 = vsel %vm508, %v510, %v506
    %v512 = vmul.f32 1.0, %v511
    %v513 = vtanh.pop %v473
    %v514 = vtanh.pop %v474
    %v515 = vmul.f32 %v497, %v435
    %v516 = vmul.f32 %v512, %v436
    %519 = vrot.lane.b32.xlu0 %v513, 80
    %v520 = vpop.permute.xlu0 %519
    %521 = vrot.lane.b32.xlu0 %v514, 80
    %v522 = vpop.permute.xlu0 %521
    %v525 = vmul.f32 %v497, %v520
    %v526 = vmul.f32 %v512, %v522
    %529 = vrot.lane.b32.xlu0 %v525, 16
    %v530 = vpop.permute.xlu0 %529
    %531 = vrot.lane.b32.xlu0 %v526, 16
    %v532 = vpop.permute.xlu0 %531
    %v535 = vadd.f32 %v515, %v530
    %v536 = vadd.f32 %v516, %v532
    %v537 = vtanh.pop %v535
    %v538 = vtanh.pop %v536
    %541 = vrot.lane.b32.xlu0 %v537, 16
    %v542 = vpop.permute.xlu0 %541
    %543 = vrot.lane.b32.xlu0 %v538, 16
    %v544 = vpop.permute.xlu0 %543
    %v547 = vmul.f32 %v497, %v542
    %v548 = vmul.f32 %v512, %v544
    %s549 = scalar_lea.vmem [#allocation2], 48
    %v550 = vld [vmem:[%s549] sm:$0xff]
    %v551 = vld [vmem:[%s549 + $0x8] sm:$0xff]
    %v552 = vpack.c.bf16 %v548, %v547
    %554 = vrot.lane.b32.xlu0 %v552, 96
    %v555 = vpop.permute.xlu0 %554
    %v557 = vsel %vm255, %v555, 0
    %559 = vmatpush.bf16.msra.mxu0 0
    %560 = vmatpush.bf16.msra.mxu0 0
    %561 = vmatpush.bf16.msra.mxu0 0
    %562 = vmatpush.bf16.msra.mxu0 0
    %563 = vmatpush.bf16.msra.mxu0 0
    %564 = vmatpush.bf16.msra.mxu0 0
    %565 = vmatpush.bf16.msra.mxu0 0
    %566 = vmatpush.bf16.msra.mxu0 %v253
    %567 = vmatmul.bf16.gmra.mxu0 %v557
    %v568 = vpop.f32.mrf.mxu0
    %v569 = vadd.f32 0.0, %v568
    %v570 = vpop.f32.mrf.mxu0
    %v571 = vadd.f32 0.0, %v570
    %572 = vdwg.mxu0
    %v573 = vadd.f32 %v550, %v569
    %v574 = vadd.f32 %v551, %v571
    %v575 = vxor.u32 %v573, 2147483648
    %v576 = vxor.u32 %v574, 2147483648
    %v577 = vmul.f32 %v575, 1.442695
    %v578 = vpow.pop %v577
    %v579 = vmul.f32 %v576, 1.442695
    %v580 = vpow.pop %v579
    %v581 = vadd.f32 %v578, 1.0
    %v582 = vadd.f32 %v580, 1.0
    %v583 = vrcp.pop %v581
    %v584 = vmul.f32 %v581, %v583
    %v585 = vsub.f32 1.0, %v584
    %v586 = vmul.f32 %v583, %v585
    %v587 = vadd.f32 %v583, %v586
    %vm588 = vweird.f32 %v581
    %vm589 = vweird.f32 %v583
    %vm590 = vmor %vm588, %vm589
    %v591 = vsel %vm590, %v583, %v587
    %v592 = vand.u32 2147483647, %v581
    %vm593 = vcmp.eq.f32.partialorder %v592, 8.507059e+37
    %v594 = vand.u32 %v581, 2147483648
    %v595 = vor.u32 1.1754944e-38, %v594
    %v596 = vsel %vm593, %v595, %v591
    %v597 = vmul.f32 1.0, %v596
    %v598 = vrcp.pop %v582
    %v599 = vmul.f32 %v582, %v598
    %v600 = vsub.f32 1.0, %v599
    %v601 = vmul.f32 %v598, %v600
    %v602 = vadd.f32 %v598, %v601
    %vm603 = vweird.f32 %v582
    %vm604 = vweird.f32 %v598
    %vm605 = vmor %vm603, %vm604
    %v606 = vsel %vm605, %v598, %v602
    %v607 = vand.u32 2147483647, %v582
    %vm608 = vcmp.eq.f32.partialorder %v607, 8.507059e+37
    %v609 = vand.u32 %v582, 2147483648
    %v610 = vor.u32 1.1754944e-38, %v609
    %v611 = vsel %vm608, %v610, %v606
    %v612 = vmul.f32 1.0, %v611
    %v613 = vtanh.pop %v573
    %v614 = vtanh.pop %v574
    %v615 = vmul.f32 %v597, %v535
    %v616 = vmul.f32 %v612, %v536
    %619 = vrot.lane.b32.xlu0 %v613, 80
    %v620 = vpop.permute.xlu0 %619
    %621 = vrot.lane.b32.xlu0 %v614, 80
    %v622 = vpop.permute.xlu0 %621
    %v625 = vmul.f32 %v597, %v620
    %v626 = vmul.f32 %v612, %v622
    %629 = vrot.lane.b32.xlu0 %v625, 16
    %v630 = vpop.permute.xlu0 %629
    %631 = vrot.lane.b32.xlu0 %v626, 16
    %v632 = vpop.permute.xlu0 %631
    %v635 = vadd.f32 %v615, %v630
    %v636 = vadd.f32 %v616, %v632
    %v637 = vtanh.pop %v635
    %v638 = vtanh.pop %v636
    %641 = vrot.lane.b32.xlu0 %v637, 16
    %v642 = vpop.permute.xlu0 %641
    %643 = vrot.lane.b32.xlu0 %v638, 16
    %v644 = vpop.permute.xlu0 %643
    %v647 = vmul.f32 %v597, %v642
    %v648 = vmul.f32 %v612, %v644
    %s649 = scalar_lea.vmem [#allocation2], 64
    %v650 = vld [vmem:[%s649] sm:$0xff]
    %v651 = vld [vmem:[%s649 + $0x8] sm:$0xff]
    %v652 = vpack.c.bf16 %v648, %v647
    %654 = vrot.lane.b32.xlu0 %v652, 96
    %v655 = vpop.permute.xlu0 %654
    %v657 = vsel %vm255, %v655, 0
    %659 = vmatpush.bf16.msra.mxu0 0
    %660 = vmatpush.bf16.msra.mxu0 0
    %661 = vmatpush.bf16.msra.mxu0 0
    %662 = vmatpush.bf16.msra.mxu0 0
    %663 = vmatpush.bf16.msra.mxu0 0
    %664 = vmatpush.bf16.msra.mxu0 0
    %665 = vmatpush.bf16.msra.mxu0 0
    %666 = vmatpush.bf16.msra.mxu0 %v253
    %667 = vmatmul.bf16.gmra.mxu0 %v657
    %v668 = vpop.f32.mrf.mxu0
    %v669 = vadd.f32 0.0, %v668
    %v670 = vpop.f32.mrf.mxu0
    %v671 = vadd.f32 0.0, %v670
    %672 = vdwg.mxu0
    %v673 = vadd.f32 %v650, %v669
    %v674 = vadd.f32 %v651, %v671
    %v675 = vxor.u32 %v673, 2147483648
    %v676 = vxor.u32 %v674, 2147483648
    %v677 = vmul.f32 %v675, 1.442695
    %v678 = vpow.pop %v677
    %v679 = vmul.f32 %v676, 1.442695
    %v680 = vpow.pop %v679
    %v681 = vadd.f32 %v678, 1.0
    %v682 = vadd.f32 %v680, 1.0
    %v683 = vrcp.pop %v681
    %v684 = vmul.f32 %v681, %v683
    %v685 = vsub.f32 1.0, %v684
    %v686 = vmul.f32 %v683, %v685
    %v687 = vadd.f32 %v683, %v686
    %vm688 = vweird.f32 %v681
    %vm689 = vweird.f32 %v683
    %vm690 = vmor %vm688, %vm689
    %v691 = vsel %vm690, %v683, %v687
    %v692 = vand.u32 2147483647, %v681
    %vm693 = vcmp.eq.f32.partialorder %v692, 8.507059e+37
    %v694 = vand.u32 %v681, 2147483648
    %v695 = vor.u32 1.1754944e-38, %v694
    %v696 = vsel %vm693, %v695, %v691
    %v697 = vmul.f32 1.0, %v696
    %v698 = vrcp.pop %v682
    %v699 = vmul.f32 %v682, %v698
    %v700 = vsub.f32 1.0, %v699
    %v701 = vmul.f32 %v698, %v700
    %v702 = vadd.f32 %v698, %v701
    %vm703 = vweird.f32 %v682
    %vm704 = vweird.f32 %v698
    %vm705 = vmor %vm703, %vm704
    %v706 = vsel %vm705, %v698, %v702
    %v707 = vand.u32 2147483647, %v682
    %vm708 = vcmp.eq.f32.partialorder %v707, 8.507059e+37
    %v709 = vand.u32 %v682, 2147483648
    %v710 = vor.u32 1.1754944e-38, %v709
    %v711 = vsel %vm708, %v710, %v706
    %v712 = vmul.f32 1.0, %v711
    %v713 = vtanh.pop %v673
    %v714 = vtanh.pop %v674
    %v715 = vmul.f32 %v697, %v635
    %v716 = vmul.f32 %v712, %v636
    %719 = vrot.lane.b32.xlu0 %v713, 80
    %v720 = vpop.permute.xlu0 %719
    %721 = vrot.lane.b32.xlu0 %v714, 80
    %v722 = vpop.permute.xlu0 %721
    %v725 = vmul.f32 %v697, %v720
    %v726 = vmul.f32 %v712, %v722
    %729 = vrot.lane.b32.xlu0 %v725, 16
    %v730 = vpop.permute.xlu0 %729
    %731 = vrot.lane.b32.xlu0 %v726, 16
    %v732 = vpop.permute.xlu0 %731
    %v735 = vadd.f32 %v715, %v730
    %v736 = vadd.f32 %v716, %v732
    %v737 = vtanh.pop %v735
    %v738 = vtanh.pop %v736
    %741 = vrot.lane.b32.xlu0 %v737, 16
    %v742 = vpop.permute.xlu0 %741
    %743 = vrot.lane.b32.xlu0 %v738, 16
    %v744 = vpop.permute.xlu0 %743
    %v747 = vmul.f32 %v697, %v742
    %v748 = vmul.f32 %v712, %v744
    %s749 = scalar_lea.vmem [#allocation2], 80
    %v750 = vld [vmem:[%s749] sm:$0xff]
    %v751 = vld [vmem:[%s749 + $0x8] sm:$0xff]
    %v752 = vpack.c.bf16 %v748, %v747
    %754 = vrot.lane.b32.xlu0 %v752, 96
    %v755 = vpop.permute.xlu0 %754
    %v757 = vsel %vm255, %v755, 0
    %759 = vmatpush.bf16.msra.mxu0 0
    %760 = vmatpush.bf16.msra.mxu0 0
    %761 = vmatpush.bf16.msra.mxu0 0
    %762 = vmatpush.bf16.msra.mxu0 0
    %763 = vmatpush.bf16.msra.mxu0 0
    %764 = vmatpush.bf16.msra.mxu0 0
    %765 = vmatpush.bf16.msra.mxu0 0
    %766 = vmatpush.bf16.msra.mxu0 %v253
    %767 = vmatmul.bf16.gmra.mxu0 %v757
    %v768 = vpop.f32.mrf.mxu0
    %v769 = vadd.f32 0.0, %v768
    %v770 = vpop.f32.mrf.mxu0
    %v771 = vadd.f32 0.0, %v770
    %772 = vdwg.mxu0
    %v773 = vadd.f32 %v750, %v769
    %v774 = vadd.f32 %v751, %v771
    %v775 = vxor.u32 %v773, 2147483648
    %v776 = vxor.u32 %v774, 2147483648
    %v777 = vmul.f32 %v775, 1.442695
    %v778 = vpow.pop %v777
    %v779 = vmul.f32 %v776, 1.442695
    %v780 = vpow.pop %v779
    %v781 = vadd.f32 %v778, 1.0
    %v782 = vadd.f32 %v780, 1.0
    %v783 = vrcp.pop %v781
    %v784 = vmul.f32 %v781, %v783
    %v785 = vsub.f32 1.0, %v784
    %v786 = vmul.f32 %v783, %v785
    %v787 = vadd.f32 %v783, %v786
    %vm788 = vweird.f32 %v781
    %vm789 = vweird.f32 %v783
    %vm790 = vmor %vm788, %vm789
    %v791 = vsel %vm790, %v783, %v787
    %v792 = vand.u32 2147483647, %v781
    %vm793 = vcmp.eq.f32.partialorder %v792, 8.507059e+37
    %v794 = vand.u32 %v781, 2147483648
    %v795 = vor.u32 1.1754944e-38, %v794
    %v796 = vsel %vm793, %v795, %v791
    %v797 = vmul.f32 1.0, %v796
    %v798 = vrcp.pop %v782
    %v799 = vmul.f32 %v782, %v798
    %v800 = vsub.f32 1.0, %v799
    %v801 = vmul.f32 %v798, %v800
    %v802 = vadd.f32 %v798, %v801
    %vm803 = vweird.f32 %v782
    %vm804 = vweird.f32 %v798
    %vm805 = vmor %vm803, %vm804
    %v806 = vsel %vm805, %v798, %v802
    %v807 = vand.u32 2147483647, %v782
    %vm808 = vcmp.eq.f32.partialorder %v807, 8.507059e+37
    %v809 = vand.u32 %v782, 2147483648
    %v810 = vor.u32 1.1754944e-38, %v809
    %v811 = vsel %vm808, %v810, %v806
    %v812 = vmul.f32 1.0, %v811
    %v813 = vtanh.pop %v773
    %v814 = vtanh.pop %v774
    %v815 = vmul.f32 %v797, %v735
    %v816 = vmul.f32 %v812, %v736
    %819 = vrot.lane.b32.xlu0 %v813, 80
    %v820 = vpop.permute.xlu0 %819
    %821 = vrot.lane.b32.xlu0 %v814, 80
    %v822 = vpop.permute.xlu0 %821
    %v825 = vmul.f32 %v797, %v820
    %v826 = vmul.f32 %v812, %v822
    %829 = vrot.lane.b32.xlu0 %v825, 16
    %v830 = vpop.permute.xlu0 %829
    %831 = vrot.lane.b32.xlu0 %v826, 16
    %v832 = vpop.permute.xlu0 %831
    %v835 = vadd.f32 %v815, %v830
    %v836 = vadd.f32 %v816, %v832
    %v837 = vtanh.pop %v835
    %v838 = vtanh.pop %v836
    %841 = vrot.lane.b32.xlu0 %v837, 16
    %v842 = vpop.permute.xlu0 %841
    %843 = vrot.lane.b32.xlu0 %v838, 16
    %v844 = vpop.permute.xlu0 %843
    %v847 = vmul.f32 %v797, %v842
    %v848 = vmul.f32 %v812, %v844
    %s849 = scalar_lea.vmem [#allocation2], 96
    %v850 = vld [vmem:[%s849] sm:$0xff]
    %v851 = vld [vmem:[%s849 + $0x8] sm:$0xff]
    %v852 = vpack.c.bf16 %v848, %v847
    %854 = vrot.lane.b32.xlu0 %v852, 96
    %v855 = vpop.permute.xlu0 %854
    %v857 = vsel %vm255, %v855, 0
    %859 = vmatpush.bf16.msra.mxu0 0
    %860 = vmatpush.bf16.msra.mxu0 0
    %861 = vmatpush.bf16.msra.mxu0 0
    %862 = vmatpush.bf16.msra.mxu0 0
    %863 = vmatpush.bf16.msra.mxu0 0
    %864 = vmatpush.bf16.msra.mxu0 0
    %865 = vmatpush.bf16.msra.mxu0 0
    %866 = vmatpush.bf16.msra.mxu0 %v253
    %867 = vmatmul.bf16.gmra.mxu0 %v857
    %v868 = vpop.f32.mrf.mxu0
    %v869 = vadd.f32 0.0, %v868
    %v870 = vpop.f32.mrf.mxu0
    %v871 = vadd.f32 0.0, %v870
    %872 = vdwg.mxu0
    %v873 = vadd.f32 %v850, %v869
    %v874 = vadd.f32 %v851, %v871
    %v875 = vxor.u32 %v873, 2147483648
    %v876 = vxor.u32 %v874, 2147483648
    %v877 = vmul.f32 %v875, 1.442695
    %v878 = vpow.pop %v877
    %v879 = vmul.f32 %v876, 1.442695
    %v880 = vpow.pop %v879
    %v881 = vadd.f32 %v878, 1.0
    %v882 = vadd.f32 %v880, 1.0
    %v883 = vrcp.pop %v881
    %v884 = vmul.f32 %v881, %v883
    %v885 = vsub.f32 1.0, %v884
    %v886 = vmul.f32 %v883, %v885
    %v887 = vadd.f32 %v883, %v886
    %vm888 = vweird.f32 %v881
    %vm889 = vweird.f32 %v883
    %vm890 = vmor %vm888, %vm889
    %v891 = vsel %vm890, %v883, %v887
    %v892 = vand.u32 2147483647, %v881
    %vm893 = vcmp.eq.f32.partialorder %v892, 8.507059e+37
    %v894 = vand.u32 %v881, 2147483648
    %v895 = vor.u32 1.1754944e-38, %v894
    %v896 = vsel %vm893, %v895, %v891
    %v897 = vmul.f32 1.0, %v896
    %v898 = vrcp.pop %v882
    %v899 = vmul.f32 %v882, %v898
    %v900 = vsub.f32 1.0, %v899
    %v901 = vmul.f32 %v898, %v900
    %v902 = vadd.f32 %v898, %v901
    %vm903 = vweird.f32 %v882
    %vm904 = vweird.f32 %v898
    %vm905 = vmor %vm903, %vm904
    %v906 = vsel %vm905, %v898, %v902
    %v907 = vand.u32 2147483647, %v882
    %vm908 = vcmp.eq.f32.partialorder %v907, 8.507059e+37
    %v909 = vand.u32 %v882, 2147483648
    %v910 = vor.u32 1.1754944e-38, %v909
    %v911 = vsel %vm908, %v910, %v906
    %v912 = vmul.f32 1.0, %v911
    %v913 = vtanh.pop %v873
    %v914 = vtanh.pop %v874
    %v915 = vmul.f32 %v897, %v835
    %v916 = vmul.f32 %v912, %v836
    %919 = vrot.lane.b32.xlu0 %v913, 80
    %v920 = vpop.permute.xlu0 %919
    %921 = vrot.lane.b32.xlu0 %v914, 80
    %v922 = vpop.permute.xlu0 %921
    %v925 = vmul.f32 %v897, %v920
    %v926 = vmul.f32 %v912, %v922
    %929 = vrot.lane.b32.xlu0 %v925, 16
    %v930 = vpop.permute.xlu0 %929
    %931 = vrot.lane.b32.xlu0 %v926, 16
    %v932 = vpop.permute.xlu0 %931
    %v935 = vadd.f32 %v915, %v930
    %v936 = vadd.f32 %v916, %v932
    %v937 = vtanh.pop %v935
    %v938 = vtanh.pop %v936
    %941 = vrot.lane.b32.xlu0 %v937, 16
    %v942 = vpop.permute.xlu0 %941
    %943 = vrot.lane.b32.xlu0 %v938, 16
    %v944 = vpop.permute.xlu0 %943
    %v947 = vmul.f32 %v897, %v942
    %v948 = vmul.f32 %v912, %v944
    %s949 = scalar_lea.vmem [#allocation2], 112
    %v950 = vld [vmem:[%s949] sm:$0xff]
    %v951 = vld [vmem:[%s949 + $0x8] sm:$0xff]
    %v952 = vpack.c.bf16 %v948, %v947
    %954 = vrot.lane.b32.xlu0 %v952, 96
    %v955 = vpop.permute.xlu0 %954
    %v957 = vsel %vm255, %v955, 0
    %959 = vmatpush.bf16.msra.mxu0 0
    %960 = vmatpush.bf16.msra.mxu0 0
    %961 = vmatpush.bf16.msra.mxu0 0
    %962 = vmatpush.bf16.msra.mxu0 0
    %963 = vmatpush.bf16.msra.mxu0 0
    %964 = vmatpush.bf16.msra.mxu0 0
    %965 = vmatpush.bf16.msra.mxu0 0
    %966 = vmatpush.bf16.msra.mxu0 %v253
    %967 = vmatmul.bf16.gmra.mxu0 %v957
    %v968 = vpop.f32.mrf.mxu0
    %v969 = vadd.f32 0.0, %v968
    %v970 = vpop.f32.mrf.mxu0
    %v971 = vadd.f32 0.0, %v970
    %972 = vdwg.mxu0
    %v973 = vadd.f32 %v950, %v969
    %v974 = vadd.f32 %v951, %v971
    %v975 = vxor.u32 %v973, 2147483648
    %v976 = vxor.u32 %v974, 2147483648
    %v977 = vmul.f32 %v975, 1.442695
    %v978 = vpow.pop %v977
    %v979 = vmul.f32 %v976, 1.442695
    %v980 = vpow.pop %v979
    %v981 = vadd.f32 %v978, 1.0
    %v982 = vadd.f32 %v980, 1.0
    %v983 = vrcp.pop %v981
    %v984 = vmul.f32 %v981, %v983
    %v985 = vsub.f32 1.0, %v984
    %v986 = vmul.f32 %v983, %v985
    %v987 = vadd.f32 %v983, %v986
    %vm988 = vweird.f32 %v981
    %vm989 = vweird.f32 %v983
    %vm990 = vmor %vm988, %vm989
    %v991 = vsel %vm990, %v983, %v987
    %v992 = vand.u32 2147483647, %v981
    %vm993 = vcmp.eq.f32.partialorder %v992, 8.507059e+37
    %v994 = vand.u32 %v981, 2147483648
    %v995 = vor.u32 1.1754944e-38, %v994
    %v996 = vsel %vm993, %v995, %v991
    %v997 = vmul.f32 1.0, %v996
    %v998 = vrcp.pop %v982
    %v999 = vmul.f32 %v982, %v998
    %v1000 = vsub.f32 1.0, %v999
    %v1001 = vmul.f32 %v998, %v1000
    %v1002 = vadd.f32 %v998, %v1001
    %vm1003 = vweird.f32 %v982
    %vm1004 = vweird.f32 %v998
    %vm1005 = vmor %vm1003, %vm1004
    %v1006 = vsel %vm1005, %v998, %v1002
    %v1007 = vand.u32 2147483647, %v982
    %vm1008 = vcmp.eq.f32.partialorder %v1007, 8.507059e+37
    %v1009 = vand.u32 %v982, 2147483648
    %v1010 = vor.u32 1.1754944e-38, %v1009
    %v1011 = vsel %vm1008, %v1010, %v1006
    %v1012 = vmul.f32 1.0, %v1011
    %v1013 = vtanh.pop %v973
    %v1014 = vtanh.pop %v974
    %v1015 = vmul.f32 %v997, %v935
    %v1016 = vmul.f32 %v1012, %v936
    %1019 = vrot.lane.b32.xlu0 %v1013, 80
    %v1020 = vpop.permute.xlu0 %1019
    %1021 = vrot.lane.b32.xlu0 %v1014, 80
    %v1022 = vpop.permute.xlu0 %1021
    %v1025 = vmul.f32 %v997, %v1020
    %v1026 = vmul.f32 %v1012, %v1022
    %1029 = vrot.lane.b32.xlu0 %v1025, 16
    %v1030 = vpop.permute.xlu0 %1029
    %1031 = vrot.lane.b32.xlu0 %v1026, 16
    %v1032 = vpop.permute.xlu0 %1031
    %v1035 = vadd.f32 %v1015, %v1030
    %v1036 = vadd.f32 %v1016, %v1032
    %v1037 = vtanh.pop %v1035
    %v1038 = vtanh.pop %v1036
    %1041 = vrot.lane.b32.xlu0 %v1037, 16
    %v1042 = vpop.permute.xlu0 %1041
    %1043 = vrot.lane.b32.xlu0 %v1038, 16
    %v1044 = vpop.permute.xlu0 %1043
    %v1047 = vmul.f32 %v997, %v1042
    %v1048 = vmul.f32 %v1012, %v1044
    %s1049 = scalar_lea.vmem [#allocation2], 128
    %v1050 = vld [vmem:[%s1049] sm:$0xff]
    %v1051 = vld [vmem:[%s1049 + $0x8] sm:$0xff]
    %v1052 = vpack.c.bf16 %v1048, %v1047
    %1054 = vrot.lane.b32.xlu0 %v1052, 96
    %v1055 = vpop.permute.xlu0 %1054
    %v1057 = vsel %vm255, %v1055, 0
    %1059 = vmatpush.bf16.msra.mxu0 0
    %1060 = vmatpush.bf16.msra.mxu0 0
    %1061 = vmatpush.bf16.msra.mxu0 0
    %1062 = vmatpush.bf16.msra.mxu0 0
    %1063 = vmatpush.bf16.msra.mxu0 0
    %1064 = vmatpush.bf16.msra.mxu0 0
    %1065 = vmatpush.bf16.msra.mxu0 0
    %1066 = vmatpush.bf16.msra.mxu0 %v253
    %1067 = vmatmul.bf16.gmra.mxu0 %v1057
    %v1068 = vpop.f32.mrf.mxu0
    %v1069 = vadd.f32 0.0, %v1068
    %v1070 = vpop.f32.mrf.mxu0
    %v1071 = vadd.f32 0.0, %v1070
    %1072 = vdwg.mxu0
    %v1073 = vadd.f32 %v1050, %v1069
    %v1074 = vadd.f32 %v1051, %v1071
    %v1075 = vxor.u32 %v1073, 2147483648
    %v1076 = vxor.u32 %v1074, 2147483648
    %v1077 = vmul.f32 %v1075, 1.442695
    %v1078 = vpow.pop %v1077
    %v1079 = vmul.f32 %v1076, 1.442695
    %v1080 = vpow.pop %v1079
    %v1081 = vadd.f32 %v1078, 1.0
    %v1082 = vadd.f32 %v1080, 1.0
    %v1083 = vrcp.pop %v1081
    %v1084 = vmul.f32 %v1081, %v1083
    %v1085 = vsub.f32 1.0, %v1084
    %v1086 = vmul.f32 %v1083, %v1085
    %v1087 = vadd.f32 %v1083, %v1086
    %vm1088 = vweird.f32 %v1081
    %vm1089 = vweird.f32 %v1083
    %vm1090 = vmor %vm1088, %vm1089
    %v1091 = vsel %vm1090, %v1083, %v1087
    %v1092 = vand.u32 2147483647, %v1081
    %vm1093 = vcmp.eq.f32.partialorder %v1092, 8.507059e+37
    %v1094 = vand.u32 %v1081, 2147483648
    %v1095 = vor.u32 1.1754944e-38, %v1094
    %v1096 = vsel %vm1093, %v1095, %v1091
    %v1097 = vmul.f32 1.0, %v1096
    %v1098 = vrcp.pop %v1082
    %v1099 = vmul.f32 %v1082, %v1098
    %v1100 = vsub.f32 1.0, %v1099
    %v1101 = vmul.f32 %v1098, %v1100
    %v1102 = vadd.f32 %v1098, %v1101
    %vm1103 = vweird.f32 %v1082
    %vm1104 = vweird.f32 %v1098
    %vm1105 = vmor %vm1103, %vm1104
    %v1106 = vsel %vm1105, %v1098, %v1102
    %v1107 = vand.u32 2147483647, %v1082
    %vm1108 = vcmp.eq.f32.partialorder %v1107, 8.507059e+37
    %v1109 = vand.u32 %v1082, 2147483648
    %v1110 = vor.u32 1.1754944e-38, %v1109
    %v1111 = vsel %vm1108, %v1110, %v1106
    %v1112 = vmul.f32 1.0, %v1111
    %v1113 = vtanh.pop %v1073
    %v1114 = vtanh.pop %v1074
    %v1115 = vmul.f32 %v1097, %v1035
    %v1116 = vmul.f32 %v1112, %v1036
    %1119 = vrot.lane.b32.xlu0 %v1113, 80
    %v1120 = vpop.permute.xlu0 %1119
    %1121 = vrot.lane.b32.xlu0 %v1114, 80
    %v1122 = vpop.permute.xlu0 %1121
    %v1125 = vmul.f32 %v1097, %v1120
    %v1126 = vmul.f32 %v1112, %v1122
    %1129 = vrot.lane.b32.xlu0 %v1125, 16
    %v1130 = vpop.permute.xlu0 %1129
    %1131 = vrot.lane.b32.xlu0 %v1126, 16
    %v1132 = vpop.permute.xlu0 %1131
    %v1135 = vadd.f32 %v1115, %v1130
    %v1136 = vadd.f32 %v1116, %v1132
    %v1137 = vtanh.pop %v1135
    %v1138 = vtanh.pop %v1136
    %1141 = vrot.lane.b32.xlu0 %v1137, 16
    %v1142 = vpop.permute.xlu0 %1141
    %1143 = vrot.lane.b32.xlu0 %v1138, 16
    %v1144 = vpop.permute.xlu0 %1143
    %v1147 = vmul.f32 %v1097, %v1142
    %v1148 = vmul.f32 %v1112, %v1144
    %s1149 = scalar_lea.vmem [#allocation2], 144
    %v1150 = vld [vmem:[%s1149] sm:$0xff]
    %v1151 = vld [vmem:[%s1149 + $0x8] sm:$0xff]
    %v1152 = vpack.c.bf16 %v1148, %v1147
    %1154 = vrot.lane.b32.xlu0 %v1152, 96
    %v1155 = vpop.permute.xlu0 %1154
    %v1157 = vsel %vm255, %v1155, 0
    %1159 = vmatpush.bf16.msra.mxu0 0
    %1160 = vmatpush.bf16.msra.mxu0 0
    %1161 = vmatpush.bf16.msra.mxu0 0
    %1162 = vmatpush.bf16.msra.mxu0 0
    %1163 = vmatpush.bf16.msra.mxu0 0
    %1164 = vmatpush.bf16.msra.mxu0 0
    %1165 = vmatpush.bf16.msra.mxu0 0
    %1166 = vmatpush.bf16.msra.mxu0 %v253
    %1167 = vmatmul.bf16.gmra.mxu0 %v1157
    %v1168 = vpop.f32.mrf.mxu0
    %v1169 = vadd.f32 0.0, %v1168
    %v1170 = vpop.f32.mrf.mxu0
    %v1171 = vadd.f32 0.0, %v1170
    %1172 = vdwg.mxu0
    %v1173 = vadd.f32 %v1150, %v1169
    %v1174 = vadd.f32 %v1151, %v1171
    %v1175 = vxor.u32 %v1173, 2147483648
    %v1176 = vxor.u32 %v1174, 2147483648
    %v1177 = vmul.f32 %v1175, 1.442695
    %v1178 = vpow.pop %v1177
    %v1179 = vmul.f32 %v1176, 1.442695
    %v1180 = vpow.pop %v1179
    %v1181 = vadd.f32 %v1178, 1.0
    %v1182 = vadd.f32 %v1180, 1.0
    %v1183 = vrcp.pop %v1181
    %v1184 = vmul.f32 %v1181, %v1183
    %v1185 = vsub.f32 1.0, %v1184
    %v1186 = vmul.f32 %v1183, %v1185
    %v1187 = vadd.f32 %v1183, %v1186
    %vm1188 = vweird.f32 %v1181
    %vm1189 = vweird.f32 %v1183
    %vm1190 = vmor %vm1188, %vm1189
    %v1191 = vsel %vm1190, %v1183, %v1187
    %v1192 = vand.u32 2147483647, %v1181
    %vm1193 = vcmp.eq.f32.partialorder %v1192, 8.507059e+37
    %v1194 = vand.u32 %v1181, 2147483648
    %v1195 = vor.u32 1.1754944e-38, %v1194
    %v1196 = vsel %vm1193, %v1195, %v1191
    %v1197 = vmul.f32 1.0, %v1196
    %v1198 = vrcp.pop %v1182
    %v1199 = vmul.f32 %v1182, %v1198
    %v1200 = vsub.f32 1.0, %v1199
    %v1201 = vmul.f32 %v1198, %v1200
    %v1202 = vadd.f32 %v1198, %v1201
    %vm1203 = vweird.f32 %v1182
    %vm1204 = vweird.f32 %v1198
    %vm1205 = vmor %vm1203, %vm1204
    %v1206 = vsel %vm1205, %v1198, %v1202
    %v1207 = vand.u32 2147483647, %v1182
    %vm1208 = vcmp.eq.f32.partialorder %v1207, 8.507059e+37
    %v1209 = vand.u32 %v1182, 2147483648
    %v1210 = vor.u32 1.1754944e-38, %v1209
    %v1211 = vsel %vm1208, %v1210, %v1206
    %v1212 = vmul.f32 1.0, %v1211
    %v1213 = vtanh.pop %v1173
    %v1214 = vtanh.pop %v1174
    %v1215 = vmul.f32 %v1197, %v1135
    %v1216 = vmul.f32 %v1212, %v1136
    %1219 = vrot.lane.b32.xlu0 %v1213, 80
    %v1220 = vpop.permute.xlu0 %1219
    %1221 = vrot.lane.b32.xlu0 %v1214, 80
    %v1222 = vpop.permute.xlu0 %1221
    %v1225 = vmul.f32 %v1197, %v1220
    %v1226 = vmul.f32 %v1212, %v1222
    %1229 = vrot.lane.b32.xlu0 %v1225, 16
    %v1230 = vpop.permute.xlu0 %1229
    %1231 = vrot.lane.b32.xlu0 %v1226, 16
    %v1232 = vpop.permute.xlu0 %1231
    %v1235 = vadd.f32 %v1215, %v1230
    %v1236 = vadd.f32 %v1216, %v1232
    %v1237 = vtanh.pop %v1235
    %v1238 = vtanh.pop %v1236
    %1241 = vrot.lane.b32.xlu0 %v1237, 16
    %v1242 = vpop.permute.xlu0 %1241
    %1243 = vrot.lane.b32.xlu0 %v1238, 16
    %v1244 = vpop.permute.xlu0 %1243
    %v1247 = vmul.f32 %v1197, %v1242
    %v1248 = vmul.f32 %v1212, %v1244
    %s1249 = scalar_lea.vmem [#allocation2], 160
    %v1250 = vld [vmem:[%s1249] sm:$0xff]
    %v1251 = vld [vmem:[%s1249 + $0x8] sm:$0xff]
    %v1252 = vpack.c.bf16 %v1248, %v1247
    %1254 = vrot.lane.b32.xlu0 %v1252, 96
    %v1255 = vpop.permute.xlu0 %1254
    %v1257 = vsel %vm255, %v1255, 0
    %1259 = vmatpush.bf16.msra.mxu0 0
    %1260 = vmatpush.bf16.msra.mxu0 0
    %1261 = vmatpush.bf16.msra.mxu0 0
    %1262 = vmatpush.bf16.msra.mxu0 0
    %1263 = vmatpush.bf16.msra.mxu0 0
    %1264 = vmatpush.bf16.msra.mxu0 0
    %1265 = vmatpush.bf16.msra.mxu0 0
    %1266 = vmatpush.bf16.msra.mxu0 %v253
    %1267 = vmatmul.bf16.gmra.mxu0 %v1257
    %v1268 = vpop.f32.mrf.mxu0
    %v1269 = vadd.f32 0.0, %v1268
    %v1270 = vpop.f32.mrf.mxu0
    %v1271 = vadd.f32 0.0, %v1270
    %1272 = vdwg.mxu0
    %v1273 = vadd.f32 %v1250, %v1269
    %v1274 = vadd.f32 %v1251, %v1271
    %v1275 = vxor.u32 %v1273, 2147483648
    %v1276 = vxor.u32 %v1274, 2147483648
    %v1277 = vmul.f32 %v1275, 1.442695
    %v1278 = vpow.pop %v1277
    %v1279 = vmul.f32 %v1276, 1.442695
    %v1280 = vpow.pop %v1279
    %v1281 = vadd.f32 %v1278, 1.0
    %v1282 = vadd.f32 %v1280, 1.0
    %v1283 = vrcp.pop %v1281
    %v1284 = vmul.f32 %v1281, %v1283
    %v1285 = vsub.f32 1.0, %v1284
    %v1286 = vmul.f32 %v1283, %v1285
    %v1287 = vadd.f32 %v1283, %v1286
    %vm1288 = vweird.f32 %v1281
    %vm1289 = vweird.f32 %v1283
    %vm1290 = vmor %vm1288, %vm1289
    %v1291 = vsel %vm1290, %v1283, %v1287
    %v1292 = vand.u32 2147483647, %v1281
    %vm1293 = vcmp.eq.f32.partialorder %v1292, 8.507059e+37
    %v1294 = vand.u32 %v1281, 2147483648
    %v1295 = vor.u32 1.1754944e-38, %v1294
    %v1296 = vsel %vm1293, %v1295, %v1291
    %v1297 = vmul.f32 1.0, %v1296
    %v1298 = vrcp.pop %v1282
    %v1299 = vmul.f32 %v1282, %v1298
    %v1300 = vsub.f32 1.0, %v1299
    %v1301 = vmul.f32 %v1298, %v1300
    %v1302 = vadd.f32 %v1298, %v1301
    %vm1303 = vweird.f32 %v1282
    %vm1304 = vweird.f32 %v1298
    %vm1305 = vmor %vm1303, %vm1304
    %v1306 = vsel %vm1305, %v1298, %v1302
    %v1307 = vand.u32 2147483647, %v1282
    %vm1308 = vcmp.eq.f32.partialorder %v1307, 8.507059e+37
    %v1309 = vand.u32 %v1282, 2147483648
    %v1310 = vor.u32 1.1754944e-38, %v1309
    %v1311 = vsel %vm1308, %v1310, %v1306
    %v1312 = vmul.f32 1.0, %v1311
    %v1313 = vtanh.pop %v1273
    %v1314 = vtanh.pop %v1274
    %v1315 = vmul.f32 %v1297, %v1235
    %v1316 = vmul.f32 %v1312, %v1236
    %1319 = vrot.lane.b32.xlu0 %v1313, 80
    %v1320 = vpop.permute.xlu0 %1319
    %1321 = vrot.lane.b32.xlu0 %v1314, 80
    %v1322 = vpop.permute.xlu0 %1321
    %v1325 = vmul.f32 %v1297, %v1320
    %v1326 = vmul.f32 %v1312, %v1322
    %1329 = vrot.lane.b32.xlu0 %v1325, 16
    %v1330 = vpop.permute.xlu0 %1329
    %1331 = vrot.lane.b32.xlu0 %v1326, 16
    %v1332 = vpop.permute.xlu0 %1331
    %v1335 = vadd.f32 %v1315, %v1330
    %v1336 = vadd.f32 %v1316, %v1332
    %v1337 = vtanh.pop %v1335
    %v1338 = vtanh.pop %v1336
    %1341 = vrot.lane.b32.xlu0 %v1337, 16
    %v1342 = vpop.permute.xlu0 %1341
    %1343 = vrot.lane.b32.xlu0 %v1338, 16
    %v1344 = vpop.permute.xlu0 %1343
    %v1347 = vmul.f32 %v1297, %v1342
    %v1348 = vmul.f32 %v1312, %v1344
    %s1349 = scalar_lea.vmem [#allocation2], 176
    %v1350 = vld [vmem:[%s1349] sm:$0xff]
    %v1351 = vld [vmem:[%s1349 + $0x8] sm:$0xff]
    %v1352 = vpack.c.bf16 %v1348, %v1347
    %1354 = vrot.lane.b32.xlu0 %v1352, 96
    %v1355 = vpop.permute.xlu0 %1354
    %v1357 = vsel %vm255, %v1355, 0
    %1359 = vmatpush.bf16.msra.mxu0 0
    %1360 = vmatpush.bf16.msra.mxu0 0
    %1361 = vmatpush.bf16.msra.mxu0 0
    %1362 = vmatpush.bf16.msra.mxu0 0
    %1363 = vmatpush.bf16.msra.mxu0 0
    %1364 = vmatpush.bf16.msra.mxu0 0
    %1365 = vmatpush.bf16.msra.mxu0 0
    %1366 = vmatpush.bf16.msra.mxu0 %v253
    %1367 = vmatmul.bf16.gmra.mxu0 %v1357
    %v1368 = vpop.f32.mrf.mxu0
    %v1369 = vadd.f32 0.0, %v1368
    %v1370 = vpop.f32.mrf.mxu0
    %v1371 = vadd.f32 0.0, %v1370
    %1372 = vdwg.mxu0
    %v1373 = vadd.f32 %v1350, %v1369
    %v1374 = vadd.f32 %v1351, %v1371
    %v1375 = vxor.u32 %v1373, 2147483648
    %v1376 = vxor.u32 %v1374, 2147483648
    %v1377 = vmul.f32 %v1375, 1.442695
    %v1378 = vpow.pop %v1377
    %v1379 = vmul.f32 %v1376, 1.442695
    %v1380 = vpow.pop %v1379
    %v1381 = vadd.f32 %v1378, 1.0
    %v1382 = vadd.f32 %v1380, 1.0
    %v1383 = vrcp.pop %v1381
    %v1384 = vmul.f32 %v1381, %v1383
    %v1385 = vsub.f32 1.0, %v1384
    %v1386 = vmul.f32 %v1383, %v1385
    %v1387 = vadd.f32 %v1383, %v1386
    %vm1388 = vweird.f32 %v1381
    %vm1389 = vweird.f32 %v1383
    %vm1390 = vmor %vm1388, %vm1389
    %v1391 = vsel %vm1390, %v1383, %v1387
    %v1392 = vand.u32 2147483647, %v1381
    %vm1393 = vcmp.eq.f32.partialorder %v1392, 8.507059e+37
    %v1394 = vand.u32 %v1381, 2147483648
    %v1395 = vor.u32 1.1754944e-38, %v1394
    %v1396 = vsel %vm1393, %v1395, %v1391
    %v1397 = vmul.f32 1.0, %v1396
    %v1398 = vrcp.pop %v1382
    %v1399 = vmul.f32 %v1382, %v1398
    %v1400 = vsub.f32 1.0, %v1399
    %v1401 = vmul.f32 %v1398, %v1400
    %v1402 = vadd.f32 %v1398, %v1401
    %vm1403 = vweird.f32 %v1382
    %vm1404 = vweird.f32 %v1398
    %vm1405 = vmor %vm1403, %vm1404
    %v1406 = vsel %vm1405, %v1398, %v1402
    %v1407 = vand.u32 2147483647, %v1382
    %vm1408 = vcmp.eq.f32.partialorder %v1407, 8.507059e+37
    %v1409 = vand.u32 %v1382, 2147483648
    %v1410 = vor.u32 1.1754944e-38, %v1409
    %v1411 = vsel %vm1408, %v1410, %v1406
    %v1412 = vmul.f32 1.0, %v1411
    %v1413 = vtanh.pop %v1373
    %v1414 = vtanh.pop %v1374
    %v1415 = vmul.f32 %v1397, %v1335
    %v1416 = vmul.f32 %v1412, %v1336
    %1419 = vrot.lane.b32.xlu0 %v1413, 80
    %v1420 = vpop.permute.xlu0 %1419
    %1421 = vrot.lane.b32.xlu0 %v1414, 80
    %v1422 = vpop.permute.xlu0 %1421
    %v1425 = vmul.f32 %v1397, %v1420
    %v1426 = vmul.f32 %v1412, %v1422
    %1429 = vrot.lane.b32.xlu0 %v1425, 16
    %v1430 = vpop.permute.xlu0 %1429
    %1431 = vrot.lane.b32.xlu0 %v1426, 16
    %v1432 = vpop.permute.xlu0 %1431
    %v1435 = vadd.f32 %v1415, %v1430
    %v1436 = vadd.f32 %v1416, %v1432
    %v1437 = vtanh.pop %v1435
    %v1438 = vtanh.pop %v1436
    %1441 = vrot.lane.b32.xlu0 %v1437, 16
    %v1442 = vpop.permute.xlu0 %1441
    %1443 = vrot.lane.b32.xlu0 %v1438, 16
    %v1444 = vpop.permute.xlu0 %1443
    %v1447 = vmul.f32 %v1397, %v1442
    %v1448 = vmul.f32 %v1412, %v1444
    %1451 = vrot.lane.b32.xlu0 %v1447, 96
    %v1452 = vpop.permute.xlu0 %1451
    %1453 = vrot.lane.b32.xlu0 %v1448, 96
    %v1454 = vpop.permute.xlu0 %1453
    %1457 = vst.msk [vmem:[%s5] sm:$0xff] %vm255, %v1452
    %1458 = vst.msk [vmem:[%s5 + $0x8] sm:$0xff] %vm255, %v1454
    // Predicated region
    $region34: #{contrastive_model_forward.1} parent=1 // pred_check
      _
    $region35: #{contrastive_model_forward.1} parent=1 // pred_check_branch
      %1460 = sbr.rel (0) target = $region37
    $region36: #{contrastive_model_forward.1} parent=1 // pred_region
      _
    $region37: #{contrastive_model_forward.1} parent=1 // pred_fallthru
      _
    // Predicated region
    $region38: #{contrastive_model_forward.1} parent=1 // pred_check
      _
    $region39: #{contrastive_model_forward.1} parent=1 // pred_check_branch
      %1462 = sbr.rel (0) target = $region41
    $region40: #{contrastive_model_forward.1} parent=1 // pred_region
      _
    $region41: #{contrastive_model_forward.1} parent=1 // pred_fallthru
      _
    %1463 = vsyncpa [#allocation4], 1
    %1464 = vsyncpa [#allocation6], 1

</llo_original>
